<compile_context>
chip_gen: v7x
topology: tpu7x:2x2x1
jax: 0.10.0
libtpu: 0.0.40
codegen_flags: <defaults>
</compile_context>

<pallas_src>
import functools
import math

import jax
import jax.numpy as jnp
from jax.experimental import pallas as pl
from jax.experimental.pallas import tpu as pltpu


def _round_up(x, m):
    return (x + m - 1) // m * m


def _vmem_capacity_bytes():
    # Per-TensorCore VMEM: 128 MiB on v5e/v6e, 64 MiB on v7x.
    try:
        return int(pltpu.get_tpu_info().vmem_capacity_bytes)
    except Exception:            # interpret mode / older runtimes
        return 64 << 20          # conservative (v7x per-TC)


def _infonce_kernel(rows_ref, cols_ref, out_ref,
                    band_ref, lsum_ref, pick_ref, emax_ref,
                    *, inv_temp, n_valid, half_b, track_max):
    r = pl.program_id(0)
    c = pl.program_id(1)
    tile_r = rows_ref.shape[0]
    tile_c = cols_ref.shape[0]
    num_c = band_ref.shape[0]

    @pl.when(c == 0)
    def _init():
        lsum_ref[...] = jnp.zeros_like(lsum_ref)
        pick_ref[...] = jnp.zeros_like(pick_ref)
        if track_max:
            emax_ref[...] = jnp.zeros_like(emax_ref)

    # TODO(synk): torch raises ValueError on NaN/inf inputs/logits; data-dependent
    # host exceptions have no in-kernel equivalent, so those checks are omitted.

    # Inputs are already unit-L2-normalized in the wrapper, so the cosine-similarity
    # tile is a single MXU dot (torch's max(n_i*n_j, 1e-8) denominator is 1, or the
    # dot is already exactly 0 for zero rows).  Contract the last dim of both
    # operands — no transpose / relayout.
    s = jax.lax.dot_general(rows_ref[...], cols_ref[...],
                            (((1,), (1,)), ((), ())),
                            preferred_element_type=jnp.float32)   # (tile_r, tile_c)

    row_idx = jax.lax.broadcasted_iota(jnp.int32, (tile_r, tile_c), 0) + r * tile_r
    col_idx = jax.lax.broadcasted_iota(jnp.int32, (tile_r, tile_c), 1) + c * tile_c
    diag = row_idx == col_idx            # masked_fill_(eye, -inf)
    col_pad = col_idx >= n_valid         # zero-padded columns (not real samples)

    # sim in [-1, 1] => exp(sim) in [1/e, e]: softmax statistics accumulate with
    # plain sums, no flash-style rescaling.  (Running the exp path in bf16 would be
    # ~2x on the EUP on v6e/v7x, but pushes the loss error past the 1e-4 check.)
    e = jnp.exp(s)
    e_valid = jnp.where(diag | col_pad, 0.0, e)

    lsum_ref[...] += jnp.sum(e_valid, axis=1, keepdims=True)

    # labels[i] = i % B; for i < B that is the masked diagonal -> picked prob is 0.
    label_col = jnp.where(row_idx < half_b, row_idx, row_idx - half_b)
    pick_ref[...] += jnp.sum(jnp.where(col_idx == label_col, e_valid, 0.0),
                             axis=1, keepdims=True)

    if track_max:   # only for pathologically small temperatures (1/T > 80)
        emax_ref[...] = jnp.maximum(emax_ref[...],
                                    jnp.max(e_valid, axis=1, keepdims=True))

    # Stash exp(sim) for the cross-entropy pass: 0 on the diagonal (prob 0),
    # -inf on padded columns so they vanish from the stage-2 logsumexp.
    band_ref[c] = jnp.where(col_pad, -jnp.inf,
                            jnp.where(diag, 0.0, e)).astype(band_ref.dtype)

    @pl.when(c == num_c - 1)
    def _finalize():
        row_g = jax.lax.broadcasted_iota(jnp.int32, (tile_r, 1), 0) + r * tile_r
        row_valid = row_g < n_valid
        # Clamp padded-row sums so the finalize stays finite (no inf/NaN even for
        # rows that get masked to 0 below).
        lsum = jnp.where(row_valid, lsum_ref[...], 1.0)
        # per-row reciprocal + broadcast multiply instead of (2B, 2B) divides.
        scale = pl.reciprocal(lsum, approx=False) * inv_temp       # prob -> logit
        lmax = emax_ref[...] * scale if track_max else None

        # Stream the second softmax (logsumexp of probabilities / T) over the band
        # one (tile_r, tile_c) slice at a time: extra VMEM footprint is one tile,
        # not a second band-sized temporary.
        def body(cc, z):
            blk = band_ref[cc].astype(jnp.float32) * scale
            if lmax is not None:
                blk = blk - lmax
            return z + jnp.sum(jnp.exp(blk), axis=1, keepdims=True)

        z = jax.lax.fori_loop(0, num_c, body,
                              jnp.zeros((tile_r, 1), jnp.float32))

        # cross_entropy(logits, labels) = logsumexp(logits) - logits[label]
        lse = jnp.log(z) + (lmax if lmax is not None else 0.0)
        ce = lse - pick_ref[...] * scale
        ce = jnp.where(row_valid, ce, 0.0)                         # zero padded rows
        # Lane-dense writeback: broadcast the per-row CE across all 128 lanes so
        # the store is an unmasked vst; the wrapper reads lane 0.
        out_ref[...] = jnp.broadcast_to(ce, (tile_r, out_ref.shape[1]))


def infonce_loss(z_i, z_j, temperature=1.0, *,
                 tile_rows=256, tile_cols=256, bf16_matmul=None):
    """InfoNCELoss().forward(z_i, z_j) -> scalar f32 loss."""
    assert z_i.ndim == 2 and z_i.shape == z_j.shape
    b, d = z_i.shape
    n = 2 * b
    inv_temp = float(1.0 / temperature)

    # Normalize once in the wrapper (F.normalize(p=2, dim=1) on the concatenation
    # equals normalizing z_i and z_j separately: it is row-wise).
    rep = jnp.concatenate([z_i, z_j], axis=0).astype(jnp.float32)
    rep = rep / jnp.maximum(jnp.linalg.norm(rep, axis=1, keepdims=True), 1e-12)

    # f32 matmul runs as a multi-pass MXU emulation; bf16 inputs only pay off once D
    # makes the matmul comparable to the exp cost (the kernel is EUP-bound for
    # small D).  Unit-norm rows keep the bf16 rounding error in sim at ~1e-3.
    use_bf16_mxu = bool(bf16_matmul) if bf16_matmul is not None else d >= 512
    if use_bf16_mxu:
        rep = rep.astype(jnp.bfloat16)
    in_item = rep.dtype.itemsize

    # tc is the lane dim of every (tr, tc) VPU/EUP op and of the band layout:
    # keep it a multiple of 128 so nothing runs on masked lanes.
    tr = _round_up(min(int(tile_rows), _round_up(n, 8)), 8)
    tc = _round_up(min(int(tile_cols), _round_up(n, 128)), 128)

    vmem_cap = _vmem_capacity_bytes()
    budget = int(vmem_cap * 0.65)          # headroom for compiler scratch / spills

    def plan(tr_, band_item):
        n_pad_r = _round_up(n, tr_)
        n_pad_c = _round_up(n, tc)
        band = (n_pad_c // tc) * tr_ * tc * band_item            # exp(sim) band
        need = (band
                + 2 * tr_ * d * in_item + 2 * tc * d * in_item   # dbl-buffered inputs
                + 2 * tr_ * 128 * 4                              # dbl-buffered output
                + 6 * tr_ * tc * 4                               # live (tr, tc) temps
                + 8 * tr_ * 4)                                   # per-row scratch
        return n_pad_r, n_pad_c, need

    band_dtype = jnp.float32
    n_pad_r, n_pad_c, need = plan(tr, 4)
    while need > budget and tr > 128:
        tr = _round_up(max(tr // 2, 128), 8)
        n_pad_r, n_pad_c, need = plan(tr, 4)
    if need > budget:
        # Halve the band (~1e-3 relative error on the stage-2 exps) — only taken
        # when the f32 band cannot fit, e.g. very large 2B on v7x's 64 MiB VMEM.
        band_dtype = jnp.bfloat16
        n_pad_r, n_pad_c, need = plan(tr, 2)
        while need > budget and tr > 64:
            tr = _round_up(max(tr // 2, 64), 8)
            n_pad_r, n_pad_c, need = plan(tr, 2)
        # TODO(synk): if even the bf16 band does not fit, a second column sweep that
        # recomputes exp(sim) once the row sums are known would drop the band.

    n_rep = max(n_pad_r, n_pad_c)
    if n_rep != n:
        rep = jnp.pad(rep, ((0, n_rep - n), (0, 0)))
    r_tiles = n_pad_r // tr
    c_tiles = n_pad_c // tc

    vmem_limit = int(min(max(need + (16 << 20), 32 << 20), int(vmem_cap * 0.92)))

    # sim in [-1, 1] -> logits in [0, 1/T]: exp cannot overflow f32 for realistic T,
    # so skip the per-step running-max (one fewer XLU reduction per grid step).
    track_max = inv_temp > 80.0

    kernel = functools.partial(_infonce_kernel, inv_temp=inv_temp,
                               n_valid=n, half_b=b, track_max=track_max)

    per_row = pl.pallas_call(
        kernel,
        out_shape=jax.ShapeDtypeStruct((n_pad_r, 128), jnp.float32),
        grid_spec=pltpu.PrefetchScalarGridSpec(
            num_scalar_prefetch=0,
            grid=(r_tiles, c_tiles),                 # column (reduction) axis last
            in_specs=[
                pl.BlockSpec((tr, d), lambda r, c: (r, 0)),   # row block of rep
                pl.BlockSpec((tc, d), lambda r, c: (c, 0)),   # col block of rep
            ],
            out_specs=pl.BlockSpec((tr, 128), lambda r, c: (r, 0)),
            scratch_shapes=[
                pltpu.VMEM((c_tiles, tr, tc), band_dtype),    # exp(sim) band
                pltpu.VMEM((tr, 1), jnp.float32),             # running sum of exp
                pltpu.VMEM((tr, 1), jnp.float32),             # picked-exp accumulator
                pltpu.VMEM((tr, 1), jnp.float32),             # running max (tiny-T only)
            ],
        ),
        compiler_params=pltpu.CompilerParams(
            dimension_semantics=("parallel", "arbitrary"),
            vmem_limit_bytes=vmem_limit),
    )(rep, rep)

    # cross_entropy(..., reduction='sum') / (2B); padded rows are already zero and
    # every lane of a row carries the same CE value, so read lane 0.
    return jnp.sum(per_row[:, 0]) / n


def _infonce_ref(z_i, z_j, temperature=1.0):
    # Pure-JAX reference mirroring the PyTorch forward exactly.
    zi = z_i / jnp.maximum(jnp.linalg.norm(z_i, axis=1, keepdims=True), 1e-12)
    zj = z_j / jnp.maximum(jnp.linalg.norm(z_j, axis=1, keepdims=True), 1e-12)
    rep = jnp.concatenate([zi, zj], axis=0)
    nrm = jnp.linalg.norm(rep, axis=1, keepdims=True)
    sim = (rep @ rep.T) / jnp.maximum(nrm * nrm.T, 1e-8)
    n = rep.shape[0]
    sim = jnp.where(jnp.eye(n, dtype=bool), -jnp.inf, sim)
    logits = jax.nn.softmax(sim, axis=1) / temperature
    labels = jnp.concatenate([jnp.arange(n // 2), jnp.arange(n // 2)])
    logp = jax.nn.log_softmax(logits, axis=1)
    return -jnp.sum(logp[jnp.arange(n), labels]) / n


if __name__ == "__main__":
    B, D = 72, 32               # small; 2B = 144 deliberately not a tile multiple
    key = jax.random.PRNGKey(0)
    k1, k2 = jax.random.split(key)
    z_i = jax.random.normal(k1, (B, D), dtype=jnp.float32)
    z_j = jax.random.normal(k2, (B, D), dtype=jnp.float32)

    # temp=0.005 exercises the running-max fallback path (1/T > 80); the 128-tile
    # config exercises multi-tile streaming + row/column padding.
    for temp in (1.0, 0.5, 0.005):
        for tiles in ((256, 256), (128, 128)):
            loss = infonce_loss(z_i, z_j, temperature=temp,
                                tile_rows=tiles[0], tile_cols=tiles[1])
            loss = jax.block_until_ready(loss)
            ref = _infonce_ref(z_i, z_j, temperature=temp)
            assert jnp.allclose(loss, ref, atol=1e-4, rtol=1e-4), (temp, tiles, loss, ref)

    print("KERNEL_OK")
</pallas_src>

<mosaic_0001>
module attributes {stable_mosaic.version = 11 : i64} {
  func.func @_infonce_kernel(%arg0: i32, %arg1: i32, %arg2: memref<144x32xf32, #tpu.memory_space<vmem>>, %arg3: memref<256x32xf32, #tpu.memory_space<vmem>>, %arg4: memref<144x128xf32, #tpu.memory_space<vmem>>, %arg5: memref<1x144x256xf32, #tpu.memory_space<vmem>>, %arg6: memref<144x1xf32, #tpu.memory_space<vmem>>, %arg7: memref<144x1xf32, #tpu.memory_space<vmem>>, %arg8: memref<144x1xf32, #tpu.memory_space<vmem>>) attributes {dimension_semantics = [#tpu.dimension_semantics<parallel>, #tpu.dimension_semantics<arbitrary>], iteration_bounds = array<i64: 1, 1>, scalar_prefetch = 0 : i64, scratch_operands = 4 : i64, tpu.core_type = #tpu.core_type<tc>, window_params = [{transform_indices = @transform_0, window_bounds = array<i64: 144, 32>}, {transform_indices = @transform_1, window_bounds = array<i64: 256, 32>}, {transform_indices = @transform_2, window_bounds = array<i64: 144, 128>}]} {
    %c0_i32 = arith.constant 0 : i32
    %0 = arith.cmpi eq, %arg1, %c0_i32 : i32
    %1 = arith.extui %0 : i1 to i32
    %c0_i32_0 = arith.constant 0 : i32
    %2 = arith.cmpi ne, %1, %c0_i32_0 : i32
    scf.if %2 {
      %cst_24 = arith.constant 0.000000e+00 : f32
      %50 = vector.broadcast %cst_24 : f32 to vector<144x1xf32>
      %c0_25 = arith.constant 0 : index
      %c0_26 = arith.constant 0 : index
      %51 = vector.load %arg6[%c0_25, %c0_26] : memref<144x1xf32, #tpu.memory_space<vmem>>, vector<144x1xf32>
      tpu.vector_store %arg6[%c0_25, %c0_26], %50 {strides = array<i32>} : memref<144x1xf32, #tpu.memory_space<vmem>>, vector<144x1xf32>,
      %cst_27 = arith.constant 0.000000e+00 : f32
      %52 = vector.broadcast %cst_27 : f32 to vector<144x1xf32>
      %c0_28 = arith.constant 0 : index
      %c0_29 = arith.constant 0 : index
      %53 = vector.load %arg7[%c0_28, %c0_29] : memref<144x1xf32, #tpu.memory_space<vmem>>, vector<144x1xf32>
      tpu.vector_store %arg7[%c0_28, %c0_29], %52 {strides = array<i32>} : memref<144x1xf32, #tpu.memory_space<vmem>>, vector<144x1xf32>,
    } else {
    }
    %c0 = arith.constant 0 : index
    %c0_1 = arith.constant 0 : index
    %3 = vector.load %arg2[%c0, %c0_1] : memref<144x32xf32, #tpu.memory_space<vmem>>, vector<144x32xf32>
    %c0_2 = arith.constant 0 : index
    %c0_3 = arith.constant 0 : index
    %4 = vector.load %arg3[%c0_2, %c0_3] : memref<256x32xf32, #tpu.memory_space<vmem>>, vector<256x32xf32>
    %cst = arith.constant dense<0.000000e+00> : vector<144x256xf32>
    %5 = tpu.matmul %3, %4, %cst {dimension_numbers = #tpu.dot_dimension_numbers<[1], [1], [0], [0], [0, 0, 1, 0], [], []>} : vector<144x32xf32>, vector<256x32xf32>, vector<144x256xf32> -> vector<144x256xf32>
    %6 = tpu.iota {dimensions = array<i32: 0>} : vector<144x256xi32>
    %c144_i32 = arith.constant 144 : i32
    %7 = arith.muli %arg0, %c144_i32 : i32
    %8 = vector.broadcast %7 : i32 to vector<144x256xi32>
    %9 = arith.addi %6, %8 : vector<144x256xi32>
    %10 = tpu.iota {dimensions = array<i32: 1>} : vector<144x256xi32>
    %c256_i32 = arith.constant 256 : i32
    %11 = arith.muli %arg1, %c256_i32 : i32
    %12 = vector.broadcast %11 : i32 to vector<144x256xi32>
    %13 = arith.addi %10, %12 : vector<144x256xi32>
    %14 = arith.cmpi eq, %9, %13 : vector<144x256xi32>
    %c144_i32_4 = arith.constant 144 : i32
    %15 = vector.broadcast %c144_i32_4 : i32 to vector<144x256xi32>
    %16 = arith.cmpi sge, %13, %15 : vector<144x256xi32>
    %17 = math.exp %5 : vector<144x256xf32>
    %18 = arith.ori %14, %16 : vector<144x256xi1>
    %cst_5 = arith.constant 0.000000e+00 : f32
    %19 = vector.broadcast %cst_5 : f32 to vector<144x256xf32>
    %20 = arith.select %18, %19, %17 : vector<144x256xi1>, vector<144x256xf32>
    %c0_6 = arith.constant 0 : index
    %c0_7 = arith.constant 0 : index
    %21 = vector.load %arg6[%c0_6, %c0_7] : memref<144x1xf32, #tpu.memory_space<vmem>>, vector<144x1xf32>
    %cst_8 = arith.constant dense<0.000000e+00> : vector<144xf32>
    %22 = vector.multi_reduction <add>, %20, %cst_8 [1] : vector<144x256xf32> to vector<144xf32>
    %23 = vector.shape_cast %22 : vector<144xf32> to vector<144x1xf32>
    %24 = arith.addf %21, %23 : vector<144x1xf32>
    %c0_9 = arith.constant 0 : index
    %c0_10 = arith.constant 0 : index
    %25 = vector.load %arg6[%c0_9, %c0_10] : memref<144x1xf32, #tpu.memory_space<vmem>>, vector<144x1xf32>
    tpu.vector_store %arg6[%c0_9, %c0_10], %24 {strides = array<i32>} : memref<144x1xf32, #tpu.memory_space<vmem>>, vector<144x1xf32>,
    %c72_i32 = arith.constant 72 : i32
    %26 = vector.broadcast %c72_i32 : i32 to vector<144x256xi32>
    %27 = arith.cmpi slt, %9, %26 : vector<144x256xi32>
    %c72_i32_11 = arith.constant 72 : i32
    %28 = vector.broadcast %c72_i32_11 : i32 to vector<144x256xi32>
    %29 = arith.subi %9, %28 : vector<144x256xi32>
    %30 = arith.select %27, %9, %29 : vector<144x256xi1>, vector<144x256xi32>
    %c0_12 = arith.constant 0 : index
    %c0_13 = arith.constant 0 : index
    %31 = vector.load %arg7[%c0_12, %c0_13] : memref<144x1xf32, #tpu.memory_space<vmem>>, vector<144x1xf32>
    %32 = arith.cmpi eq, %13, %30 : vector<144x256xi32>
    %cst_14 = arith.constant 0.000000e+00 : f32
    %33 = vector.broadcast %cst_14 : f32 to vector<144x256xf32>
    %34 = arith.select %32, %20, %33 : vector<144x256xi1>, vector<144x256xf32>
    %cst_15 = arith.constant dense<0.000000e+00> : vector<144xf32>
    %35 = vector.multi_reduction <add>, %34, %cst_15 [1] : vector<144x256xf32> to vector<144xf32>
    %36 = vector.shape_cast %35 : vector<144xf32> to vector<144x1xf32>
    %37 = arith.addf %31, %36 : vector<144x1xf32>
    %c0_16 = arith.constant 0 : index
    %c0_17 = arith.constant 0 : index
    %38 = vector.load %arg7[%c0_16, %c0_17] : memref<144x1xf32, #tpu.memory_space<vmem>>, vector<144x1xf32>
    tpu.vector_store %arg7[%c0_16, %c0_17], %37 {strides = array<i32>} : memref<144x1xf32, #tpu.memory_space<vmem>>, vector<144x1xf32>,
    %cst_18 = arith.constant 0.000000e+00 : f32
    %39 = vector.broadcast %cst_18 : f32 to vector<144x256xf32>
    %40 = arith.select %14, %39, %17 : vector<144x256xi1>, vector<144x256xf32>
    %cst_19 = arith.constant 0xFF800000 : f32
    %41 = vector.broadcast %cst_19 : f32 to vector<144x256xf32>
    %42 = arith.select %16, %41, %40 : vector<144x256xi1>, vector<144x256xf32>
    %43 = arith.index_cast %arg1 : i32 to index
    %c0_20 = arith.constant 0 : index
    %c0_21 = arith.constant 0 : index
    %44 = vector.load %arg5[%43, %c0_20, %c0_21] : memref<1x144x256xf32, #tpu.memory_space<vmem>>, vector<1x144x256xf32>
    %45 = vector.shape_cast %44 : vector<1x144x256xf32> to vector<144x256xf32>
    %46 = vector.shape_cast %42 : vector<144x256xf32> to vector<1x144x256xf32>
    tpu.vector_store %arg5[%43, %c0_20, %c0_21], %46 {strides = array<i32>} : memref<1x144x256xf32, #tpu.memory_space<vmem>>, vector<1x144x256xf32>,
    %c0_i32_22 = arith.constant 0 : i32
    %47 = arith.cmpi eq, %arg1, %c0_i32_22 : i32
    %48 = arith.extui %47 : i1 to i32
    %c0_i32_23 = arith.constant 0 : i32
    %49 = arith.cmpi ne, %48, %c0_i32_23 : i32
    scf.if %49 {
      %50 = tpu.iota {dimensions = array<i32: 0>} : vector<144x1xi32>
      %c144_i32_24 = arith.constant 144 : i32
      %51 = arith.muli %arg0, %c144_i32_24 : i32
      %52 = vector.broadcast %51 : i32 to vector<144x1xi32>
      %53 = arith.addi %50, %52 : vector<144x1xi32>
      %c144_i32_25 = arith.constant 144 : i32
      %54 = vector.broadcast %c144_i32_25 : i32 to vector<144x1xi32>
      %55 = arith.cmpi slt, %53, %54 : vector<144x1xi32>
      %c0_26 = arith.constant 0 : index
      %c0_27 = arith.constant 0 : index
      %56 = vector.load %arg6[%c0_26, %c0_27] : memref<144x1xf32, #tpu.memory_space<vmem>>, vector<144x1xf32>
      %cst_28 = arith.constant 1.000000e+00 : f32
      %57 = vector.broadcast %cst_28 : f32 to vector<144x1xf32>
      %58 = arith.select %55, %56, %57 : vector<144x1xi1>, vector<144x1xf32>
      %59 = tpu.reciprocal %58 : vector<144x1xf32> -> vector<144x1xf32>
      %cst_29 = arith.constant 1.000000e+00 : f32
      %60 = vector.broadcast %cst_29 : f32 to vector<144x1xf32>
      %61 = arith.mulf %59, %60 : vector<144x1xf32>
      %cst_30 = arith.constant 0.000000e+00 : f32
      %62 = vector.broadcast %cst_30 : f32 to vector<144x1xf32>
      %c0_i32_31 = arith.constant 0 : i32
      %63 = arith.index_cast %c0_i32_31 : i32 to index
      %c0_32 = arith.constant 0 : index
      %c0_33 = arith.constant 0 : index
      %64 = vector.load %arg5[%63, %c0_32, %c0_33] : memref<1x144x256xf32, #tpu.memory_space<vmem>>, vector<1x144x256xf32>
      %65 = vector.shape_cast %64 : vector<1x144x256xf32> to vector<144x256xf32>
      %66 = vector.broadcast %61 : vector<144x1xf32> to vector<144x256xf32>
      %67 = arith.mulf %65, %66 : vector<144x256xf32>
      %68 = math.exp %67 : vector<144x256xf32>
      %cst_34 = arith.constant dense<0.000000e+00> : vector<144xf32>
      %69 = vector.multi_reduction <add>, %68, %cst_34 [1] : vector<144x256xf32> to vector<144xf32>
      %70 = vector.shape_cast %69 : vector<144xf32> to vector<144x1xf32>
      %71 = arith.addf %62, %70 : vector<144x1xf32>
      %c1_i32 = arith.constant 1 : i32
      %72 = math.log %71 : vector<144x1xf32>
      %cst_35 = arith.constant 0.000000e+00 : f32
      %73 = vector.broadcast %cst_35 : f32 to vector<144x1xf32>
      %74 = arith.addf %72, %73 : vector<144x1xf32>
      %c0_36 = arith.constant 0 : index
      %c0_37 = arith.constant 0 : index
      %75 = vector.load %arg7[%c0_36, %c0_37] : memref<144x1xf32, #tpu.memory_space<vmem>>, vector<144x1xf32>
      %76 = arith.mulf %75, %61 : vector<144x1xf32>
      %77 = arith.subf %74, %76 : vector<144x1xf32>
      %cst_38 = arith.constant 0.000000e+00 : f32
      %78 = vector.broadcast %cst_38 : f32 to vector<144x1xf32>
      %79 = arith.select %55, %77, %78 : vector<144x1xi1>, vector<144x1xf32>
      %80 = vector.shape_cast %79 : vector<144x1xf32> to vector<144x1xf32>
      %81 = vector.broadcast %80 : vector<144x1xf32> to vector<144x128xf32>
      %c0_39 = arith.constant 0 : index
      %c0_40 = arith.constant 0 : index
      %82 = vector.load %arg4[%c0_39, %c0_40] : memref<144x128xf32, #tpu.memory_space<vmem>>, vector<144x128xf32>
      tpu.vector_store %arg4[%c0_39, %c0_40], %81 {strides = array<i32>} : memref<144x128xf32, #tpu.memory_space<vmem>>, vector<144x128xf32>,
    } else {
    }
    return
  }
  func.func @transform_0(%arg0: i32, %arg1: i32) -> (i32, i32) {
    %c0_i32 = arith.constant 0 : i32
    %c0_i32_0 = arith.constant 0 : i32
    return %arg0, %c0_i32 : i32, i32
  }
  func.func @transform_1(%arg0: i32, %arg1: i32) -> (i32, i32) {
    %c0_i32 = arith.constant 0 : i32
    %c0_i32_0 = arith.constant 0 : i32
    return %arg1, %c0_i32 : i32, i32
  }
  func.func @transform_2(%arg0: i32, %arg1: i32) -> (i32, i32) {
    %c0_i32 = arith.constant 0 : i32
    %c0_i32_0 = arith.constant 0 : i32
    return %arg0, %c0_i32 : i32, i32
  }
}

</mosaic_0001>

<llo_original>
// kernel: tpu_custom_call.1
$region0: #{tpu_custom_call.1}
  #allocation0 [shape = 'u32[]', space=smem, size = 0x4, offset = 0x4, fixed_abs, tag = 'smem constant byte address 0x4 - core index']
  #allocation1 [shape = 'u32[144,128]{1,0:T(1,128)}', space=vmem, size = 0x12000, scoped, tag = 'internal scratch']
  #allocation2 [shape = 'f32[1,144,256]{2,1,0:T(8,128)}', space=vmem, size = 0x24000, scoped, tag = 'scratch operand']
  #allocation3 [shape = 'f32[144,1]{1,0:T(8,128)}', space=vmem, size = 0x12000, scoped, tag = 'scratch operand']
  #allocation4 [shape = 'f32[144,1]{1,0:T(8,128)}', space=vmem, size = 0x12000, scoped, tag = 'scratch operand']
  #allocation5 [shape = 'f32[144,1]{1,0:T(8,128)}', space=vmem, size = 0x12000, scoped, tag = 'scratch operand']
  %s0 = inlined_call_operand.vmem [shape: f32[256,32], index: 0, kind: input, shape index: {}]
  %s1 = inlined_call_operand.vmem [shape: f32[256,32], index: 1, kind: input, shape index: {}]
  %s2 = inlined_call_operand.hbm [shape: f32[144,128], index: 2, kind: output, shape index: {}]
  %s3 = sld [smem:[#allocation0]]
  $region26: #{tpu_custom_call.1} parent=0
    _
  %s5 = ssub.s32 1, %s3
  %s6 = scalar_select 0, %s5, %s3
  $region1: #{tpu_custom_call.1} parent=0
    #allocation6 [shape = 'u8[73728]{0}', space=vmem, size = 0x12000, scoped, tag = 'output window, operand 0, single buffered']
    #allocation7 [shape = 's32[1]{0}', space=sflag, size = 0x4, scoped, tag = 'scoped memory for tpu_custom_call.1']
    %7 = vsyncpa [#allocation7], 0
    // Predicated region
    $region2: #{tpu_custom_call.1} parent=1 // pred_check
      _
    $region3: #{tpu_custom_call.1} parent=1 // pred_check_branch
      %9 = sbr.rel (0) target = $region5
    $region4: #{tpu_custom_call.1} parent=1 // pred_region
      _
    $region5: #{tpu_custom_call.1} parent=1 // pred_fallthru
      _
    // Predicated region
    $region6: #{tpu_custom_call.1} parent=1 // pred_check
      _
    $region7: #{tpu_custom_call.1} parent=1 // pred_check_branch
      %11 = sbr.rel (0) target = $region9
    $region8: #{tpu_custom_call.1} parent=1 // pred_region
      _
    $region9: #{tpu_custom_call.1} parent=1 // pred_fallthru
      _
    %p12 = scmp.eq.s32.totalorder 0, 0
    // Predicated region
    $region10: #{tpu_custom_call.1} parent=1 // pred_check
      %p13 = pneg %p12
    $region11: #{tpu_custom_call.1} parent=1 // pred_check_branch
      %15 = sbr.rel (%p13) target = $region13
    $region12: #{tpu_custom_call.1} parent=1 // pred_region
      %vm16 = vcmask 7168
      %17 = vst.msk [vmem:[#allocation3] sm:$0xff] %vm16, 0.0
      %18 = vst.msk [vmem:[#allocation3 + $0x8] sm:$0xff] %vm16, 0.0
      %19 = vst.msk [vmem:[#allocation3 + $0x10] sm:$0xff] %vm16, 0.0
      %20 = vst.msk [vmem:[#allocation3 + $0x18] sm:$0xff] %vm16, 0.0
      %21 = vst.msk [vmem:[#allocation3 + $0x20] sm:$0xff] %vm16, 0.0
      %22 = vst.msk [vmem:[#allocation3 + $0x28] sm:$0xff] %vm16, 0.0
      %23 = vst.msk [vmem:[#allocation3 + $0x30] sm:$0xff] %vm16, 0.0
      %24 = vst.msk [vmem:[#allocation3 + $0x38] sm:$0xff] %vm16, 0.0
      %25 = vst.msk [vmem:[#allocation3 + $0x40] sm:$0xff] %vm16, 0.0
      %26 = vst.msk [vmem:[#allocation3 + $0x48] sm:$0xff] %vm16, 0.0
      %27 = vst.msk [vmem:[#allocation3 + $0x50] sm:$0xff] %vm16, 0.0
      %28 = vst.msk [vmem:[#allocation3 + $0x58] sm:$0xff] %vm16, 0.0
      %29 = vst.msk [vmem:[#allocation3 + $0x60] sm:$0xff] %vm16, 0.0
      %30 = vst.msk [vmem:[#allocation3 + $0x68] sm:$0xff] %vm16, 0.0
      %31 = vst.msk [vmem:[#allocation3 + $0x70] sm:$0xff] %vm16, 0.0
      %32 = vst.msk [vmem:[#allocation3 + $0x78] sm:$0xff] %vm16, 0.0
      %33 = vst.msk [vmem:[#allocation3 + $0x80] sm:$0xff] %vm16, 0.0
      %34 = vst.msk [vmem:[#allocation3 + $0x88] sm:$0xff] %vm16, 0.0
      %35 = vst.msk [vmem:[#allocation4] sm:$0xff] %vm16, 0.0
      %36 = vst.msk [vmem:[#allocation4 + $0x8] sm:$0xff] %vm16, 0.0
      %37 = vst.msk [vmem:[#allocation4 + $0x10] sm:$0xff] %vm16, 0.0
      %38 = vst.msk [vmem:[#allocation4 + $0x18] sm:$0xff] %vm16, 0.0
      %39 = vst.msk [vmem:[#allocation4 + $0x20] sm:$0xff] %vm16, 0.0
      %40 = vst.msk [vmem:[#allocation4 + $0x28] sm:$0xff] %vm16, 0.0
      %41 = vst.msk [vmem:[#allocation4 + $0x30] sm:$0xff] %vm16, 0.0
      %42 = vst.msk [vmem:[#allocation4 + $0x38] sm:$0xff] %vm16, 0.0
      %43 = vst.msk [vmem:[#allocation4 + $0x40] sm:$0xff] %vm16, 0.0
      %44 = vst.msk [vmem:[#allocation4 + $0x48] sm:$0xff] %vm16, 0.0
      %45 = vst.msk [vmem:[#allocation4 + $0x50] sm:$0xff] %vm16, 0.0
      %46 = vst.msk [vmem:[#allocation4 + $0x58] sm:$0xff] %vm16, 0.0
      %47 = vst.msk [vmem:[#allocation4 + $0x60] sm:$0xff] %vm16, 0.0
      %48 = vst.msk [vmem:[#allocation4 + $0x68] sm:$0xff] %vm16, 0.0
      %49 = vst.msk [vmem:[#allocation4 + $0x70] sm:$0xff] %vm16, 0.0
      %50 = vst.msk [vmem:[#allocation4 + $0x78] sm:$0xff] %vm16, 0.0
      %51 = vst.msk [vmem:[#allocation4 + $0x80] sm:$0xff] %vm16, 0.0
      %52 = vst.msk [vmem:[#allocation4 + $0x88] sm:$0xff] %vm16, 0.0
    $region13: #{tpu_custom_call.1} parent=1 // pred_fallthru
      _
    %v53 = vld [vmem:[%s0] sm:$0xff]
    %v54 = vld [vmem:[%s0 + $0x8] sm:$0xff]
    %v55 = vld [vmem:[%s0 + $0x10] sm:$0xff]
    %v56 = vld [vmem:[%s0 + $0x18] sm:$0xff]
    %v57 = vld [vmem:[%s0 + $0x20] sm:$0xff]
    %v58 = vld [vmem:[%s0 + $0x28] sm:$0xff]
    %v59 = vld [vmem:[%s0 + $0x30] sm:$0xff]
    %v60 = vld [vmem:[%s0 + $0x38] sm:$0xff]
    %v61 = vld [vmem:[%s0 + $0x40] sm:$0xff]
    %v62 = vld [vmem:[%s0 + $0x48] sm:$0xff]
    %v63 = vld [vmem:[%s0 + $0x50] sm:$0xff]
    %v64 = vld [vmem:[%s0 + $0x58] sm:$0xff]
    %v65 = vld [vmem:[%s0 + $0x60] sm:$0xff]
    %v66 = vld [vmem:[%s0 + $0x68] sm:$0xff]
    %v67 = vld [vmem:[%s0 + $0x70] sm:$0xff]
    %v68 = vld [vmem:[%s0 + $0x78] sm:$0xff]
    %v69 = vld [vmem:[%s0 + $0x80] sm:$0xff]
    %v70 = vld [vmem:[%s0 + $0x88] sm:$0xff]
    %v71 = vld [vmem:[%s1] sm:$0xff]
    %v72 = vld [vmem:[%s1 + $0x8] sm:$0xff]
    %v73 = vld [vmem:[%s1 + $0x10] sm:$0xff]
    %v74 = vld [vmem:[%s1 + $0x18] sm:$0xff]
    %v75 = vld [vmem:[%s1 + $0x20] sm:$0xff]
    %v76 = vld [vmem:[%s1 + $0x28] sm:$0xff]
    %v77 = vld [vmem:[%s1 + $0x30] sm:$0xff]
    %v78 = vld [vmem:[%s1 + $0x38] sm:$0xff]
    %v79 = vld [vmem:[%s1 + $0x40] sm:$0xff]
    %v80 = vld [vmem:[%s1 + $0x48] sm:$0xff]
    %v81 = vld [vmem:[%s1 + $0x50] sm:$0xff]
    %v82 = vld [vmem:[%s1 + $0x58] sm:$0xff]
    %v83 = vld [vmem:[%s1 + $0x60] sm:$0xff]
    %v84 = vld [vmem:[%s1 + $0x68] sm:$0xff]
    %v85 = vld [vmem:[%s1 + $0x70] sm:$0xff]
    %v86 = vld [vmem:[%s1 + $0x78] sm:$0xff]
    %v87 = vld [vmem:[%s1 + $0x80] sm:$0xff]
    %v88 = vld [vmem:[%s1 + $0x88] sm:$0xff]
    %v89 = vld [vmem:[%s1 + $0x90] sm:$0xff]
    %v90 = vld [vmem:[%s1 + $0x98] sm:$0xff]
    %v91 = vld [vmem:[%s1 + $0xa0] sm:$0xff]
    %v92 = vld [vmem:[%s1 + $0xa8] sm:$0xff]
    %v93 = vld [vmem:[%s1 + $0xb0] sm:$0xff]
    %v94 = vld [vmem:[%s1 + $0xb8] sm:$0xff]
    %v95 = vld [vmem:[%s1 + $0xc0] sm:$0xff]
    %v96 = vld [vmem:[%s1 + $0xc8] sm:$0xff]
    %v97 = vld [vmem:[%s1 + $0xd0] sm:$0xff]
    %v98 = vld [vmem:[%s1 + $0xd8] sm:$0xff]
    %v99 = vld [vmem:[%s1 + $0xe0] sm:$0xff]
    %v100 = vld [vmem:[%s1 + $0xe8] sm:$0xff]
    %v101 = vld [vmem:[%s1 + $0xf0] sm:$0xff]
    %v102 = vld [vmem:[%s1 + $0xf8] sm:$0xff]
    %vm103 = vcmask 261120
    %v105 = vsel %vm103, %v53, 0
    %v108 = vsel %vm103, %v54, 0
    %v111 = vsel %vm103, %v55, 0
    %v114 = vsel %vm103, %v56, 0
    %v117 = vsel %vm103, %v57, 0
    %v120 = vsel %vm103, %v58, 0
    %v123 = vsel %vm103, %v59, 0
    %v126 = vsel %vm103, %v60, 0
    %v129 = vsel %vm103, %v61, 0
    %v132 = vsel %vm103, %v62, 0
    %v135 = vsel %vm103, %v63, 0
    %v138 = vsel %vm103, %v64, 0
    %v141 = vsel %vm103, %v65, 0
    %v144 = vsel %vm103, %v66, 0
    %v147 = vsel %vm103, %v67, 0
    %v150 = vsel %vm103, %v68, 0
    %v153 = vsel %vm103, %v69, 0
    %v156 = vsel %vm103, %v70, 0
    %v159 = vsel %vm103, %v71, 0
    %v162 = vsel %vm103, %v72, 0
    %v165 = vsel %vm103, %v73, 0
    %v168 = vsel %vm103, %v74, 0
    %v171 = vsel %vm103, %v75, 0
    %v174 = vsel %vm103, %v76, 0
    %v177 = vsel %vm103, %v77, 0
    %v180 = vsel %vm103, %v78, 0
    %v183 = vsel %vm103, %v79, 0
    %v186 = vsel %vm103, %v80, 0
    %v189 = vsel %vm103, %v81, 0
    %v192 = vsel %vm103, %v82, 0
    %v195 = vsel %vm103, %v83, 0
    %v198 = vsel %vm103, %v84, 0
    %v201 = vsel %vm103, %v85, 0
    %v204 = vsel %vm103, %v86, 0
    %v207 = vsel %vm103, %v87, 0
    %v210 = vsel %vm103, %v88, 0
    %v213 = vsel %vm103, %v89, 0
    %v216 = vsel %vm103, %v90, 0
    %v219 = vsel %vm103, %v91, 0
    %v222 = vsel %vm103, %v92, 0
    %v225 = vsel %vm103, %v93, 0
    %v228 = vsel %vm103, %v94, 0
    %v231 = vsel %vm103, %v95, 0
    %v234 = vsel %vm103, %v96, 0
    %v237 = vsel %vm103, %v97, 0
    %v240 = vsel %vm103, %v98, 0
    %v243 = vsel %vm103, %v99, 0
    %v246 = vsel %vm103, %v100, 0
    %v249 = vsel %vm103, %v101, 0
    %v252 = vsel %vm103, %v102, 0
    %254 = vmatprep.subr.mxu0 0.0
    %255 = vmatpush1.xpose.msra.mxu0 %v159
    %256 = vmatprep.subr.mxu0 0.0
    %257 = vmatpush1.xpose.msra.mxu0 %v162
    %258 = vmatprep.subr.mxu0 0.0
    %259 = vmatpush1.xpose.msra.mxu0 %v165
    %260 = vmatprep.subr.mxu0 0.0
    %261 = vmatpush1.xpose.msra.mxu0 %v168
    %262 = vmatprep.subr.mxu0 0.0
    %263 = vmatpush1.xpose.msra.mxu0 %v171
    %264 = vmatprep.subr.mxu0 0.0
    %265 = vmatpush1.xpose.msra.mxu0 %v174
    %266 = vmatprep.subr.mxu0 0.0
    %267 = vmatpush1.xpose.msra.mxu0 %v177
    %268 = vmatprep.subr.mxu0 0.0
    %269 = vmatpush1.xpose.msra.mxu0 %v180
    %270 = vmatprep.subr.mxu0 0.0
    %271 = vmatpush1.xpose.msra.mxu0 %v183
    %272 = vmatprep.subr.mxu0 0.0
    %273 = vmatpush1.xpose.msra.mxu0 %v186
    %274 = vmatprep.subr.mxu0 0.0
    %275 = vmatpush1.xpose.msra.mxu0 %v189
    %276 = vmatprep.subr.mxu0 0.0
    %277 = vmatpush1.xpose.msra.mxu0 %v192
    %278 = vmatprep.subr.mxu0 0.0
    %279 = vmatpush1.xpose.msra.mxu0 %v195
    %280 = vmatprep.subr.mxu0 0.0
    %281 = vmatpush1.xpose.msra.mxu0 %v198
    %282 = vmatprep.subr.mxu0 0.0
    %283 = vmatpush1.xpose.msra.mxu0 %v201
    %284 = vmatprep.subr.mxu0 0.0
    %285 = vmatpush1.xpose.msra.mxu0 %v204
    %286 = vmatprep.subr.mxu0 0.0
    %287 = vmatpush1.xpose.msra.mxu0 %v207
    %288 = vmatprep.subr.mxu0 0.0
    %289 = vmatpush1.xpose.msra.mxu0 %v210
    %290 = vmatprep.subr.mxu0 0.0
    %291 = vmatpush1.xpose.msra.mxu0 %v213
    %292 = vmatprep.subr.mxu0 0.0
    %293 = vmatpush1.xpose.msra.mxu0 %v216
    %294 = vmatprep.subr.mxu0 0.0
    %295 = vmatpush1.xpose.msra.mxu0 %v219
    %296 = vmatprep.subr.mxu0 0.0
    %297 = vmatpush1.xpose.msra.mxu0 %v222
    %298 = vmatprep.subr.mxu0 0.0
    %299 = vmatpush1.xpose.msra.mxu0 %v225
    %300 = vmatprep.subr.mxu0 0.0
    %301 = vmatpush1.xpose.msra.mxu0 %v228
    %302 = vmatprep.subr.mxu0 0.0
    %303 = vmatpush1.xpose.msra.mxu0 %v231
    %304 = vmatprep.subr.mxu0 0.0
    %305 = vmatpush1.xpose.msra.mxu0 %v234
    %306 = vmatprep.subr.mxu0 0.0
    %307 = vmatpush1.xpose.msra.mxu0 %v237
    %308 = vmatprep.subr.mxu0 0.0
    %309 = vmatpush1.xpose.msra.mxu0 %v240
    %310 = vmatprep.subr.mxu0 0.0
    %311 = vmatpush1.xpose.msra.mxu0 %v243
    %312 = vmatprep.subr.mxu0 0.0
    %313 = vmatpush1.xpose.msra.mxu0 %v246
    %314 = vmatprep.subr.mxu0 0.0
    %315 = vmatpush1.xpose.msra.mxu0 %v249
    %316 = vmatprep.subr.mxu0 0.0
    %317 = vmatpush1.xpose.msra.mxu0 %v252
    %318 = vmatprep.mubr.f32.mxu0 0.0
    %319 = vmatmul.mubr.f32.gmra.mrb[0].mxu0 %v105
    %v320 = vpop.f32.mrb[0].mxu0
    %v321 = vadd.f32 0.0, %v320
    %v322 = vpop.f32.mrb[0].mxu0
    %v323 = vadd.f32 0.0, %v322
    %324 = vmatprep.mubr.f32.mxu0 0.0
    %325 = vmatmul.mubr.f32.gmra.mrb[0].mxu0 %v108
    %v326 = vpop.f32.mrb[0].mxu0
    %v327 = vadd.f32 0.0, %v326
    %v328 = vpop.f32.mrb[0].mxu0
    %v329 = vadd.f32 0.0, %v328
    %330 = vmatprep.mubr.f32.mxu0 0.0
    %331 = vmatmul.mubr.f32.gmra.mrb[0].mxu0 %v111
    %v332 = vpop.f32.mrb[0].mxu0
    %v333 = vadd.f32 0.0, %v332
    %v334 = vpop.f32.mrb[0].mxu0
    %v335 = vadd.f32 0.0, %v334
    %336 = vmatprep.mubr.f32.mxu0 0.0
    %337 = vmatmul.mubr.f32.gmra.mrb[0].mxu0 %v114
    %v338 = vpop.f32.mrb[0].mxu0
    %v339 = vadd.f32 0.0, %v338
    %v340 = vpop.f32.mrb[0].mxu0
    %v341 = vadd.f32 0.0, %v340
    %342 = vmatprep.mubr.f32.mxu0 0.0
    %343 = vmatmul.mubr.f32.gmra.mrb[0].mxu0 %v117
    %v344 = vpop.f32.mrb[0].mxu0
    %v345 = vadd.f32 0.0, %v344
    %v346 = vpop.f32.mrb[0].mxu0
    %v347 = vadd.f32 0.0, %v346
    %348 = vmatprep.mubr.f32.mxu0 0.0
    %349 = vmatmul.mubr.f32.gmra.mrb[0].mxu0 %v120
    %v350 = vpop.f32.mrb[0].mxu0
    %v351 = vadd.f32 0.0, %v350
    %v352 = vpop.f32.mrb[0].mxu0
    %v353 = vadd.f32 0.0, %v352
    %354 = vmatprep.mubr.f32.mxu0 0.0
    %355 = vmatmul.mubr.f32.gmra.mrb[0].mxu0 %v123
    %v356 = vpop.f32.mrb[0].mxu0
    %v357 = vadd.f32 0.0, %v356
    %v358 = vpop.f32.mrb[0].mxu0
    %v359 = vadd.f32 0.0, %v358
    %360 = vmatprep.mubr.f32.mxu0 0.0
    %361 = vmatmul.mubr.f32.gmra.mrb[0].mxu0 %v126
    %v362 = vpop.f32.mrb[0].mxu0
    %v363 = vadd.f32 0.0, %v362
    %v364 = vpop.f32.mrb[0].mxu0
    %v365 = vadd.f32 0.0, %v364
    %366 = vmatprep.mubr.f32.mxu0 0.0
    %367 = vmatmul.mubr.f32.gmra.mrb[0].mxu0 %v129
    %v368 = vpop.f32.mrb[0].mxu0
    %v369 = vadd.f32 0.0, %v368
    %v370 = vpop.f32.mrb[0].mxu0
    %v371 = vadd.f32 0.0, %v370
    %372 = vmatprep.mubr.f32.mxu0 0.0
    %373 = vmatmul.mubr.f32.gmra.mrb[0].mxu0 %v132
    %v374 = vpop.f32.mrb[0].mxu0
    %v375 = vadd.f32 0.0, %v374
    %v376 = vpop.f32.mrb[0].mxu0
    %v377 = vadd.f32 0.0, %v376
    %378 = vmatprep.mubr.f32.mxu0 0.0
    %379 = vmatmul.mubr.f32.gmra.mrb[0].mxu0 %v135
    %v380 = vpop.f32.mrb[0].mxu0
    %v381 = vadd.f32 0.0, %v380
    %v382 = vpop.f32.mrb[0].mxu0
    %v383 = vadd.f32 0.0, %v382
    %384 = vmatprep.mubr.f32.mxu0 0.0
    %385 = vmatmul.mubr.f32.gmra.mrb[0].mxu0 %v138
    %v386 = vpop.f32.mrb[0].mxu0
    %v387 = vadd.f32 0.0, %v386
    %v388 = vpop.f32.mrb[0].mxu0
    %v389 = vadd.f32 0.0, %v388
    %390 = vmatprep.mubr.f32.mxu0 0.0
    %391 = vmatmul.mubr.f32.gmra.mrb[0].mxu0 %v141
    %v392 = vpop.f32.mrb[0].mxu0
    %v393 = vadd.f32 0.0, %v392
    %v394 = vpop.f32.mrb[0].mxu0
    %v395 = vadd.f32 0.0, %v394
    %396 = vmatprep.mubr.f32.mxu0 0.0
    %397 = vmatmul.mubr.f32.gmra.mrb[0].mxu0 %v144
    %v398 = vpop.f32.mrb[0].mxu0
    %v399 = vadd.f32 0.0, %v398
    %v400 = vpop.f32.mrb[0].mxu0
    %v401 = vadd.f32 0.0, %v400
    %402 = vmatprep.mubr.f32.mxu0 0.0
    %403 = vmatmul.mubr.f32.gmra.mrb[0].mxu0 %v147
    %v404 = vpop.f32.mrb[0].mxu0
    %v405 = vadd.f32 0.0, %v404
    %v406 = vpop.f32.mrb[0].mxu0
    %v407 = vadd.f32 0.0, %v406
    %408 = vmatprep.mubr.f32.mxu0 0.0
    %409 = vmatmul.mubr.f32.gmra.mrb[0].mxu0 %v150
    %v410 = vpop.f32.mrb[0].mxu0
    %v411 = vadd.f32 0.0, %v410
    %v412 = vpop.f32.mrb[0].mxu0
    %v413 = vadd.f32 0.0, %v412
    %414 = vmatprep.mubr.f32.mxu0 0.0
    %415 = vmatmul.mubr.f32.gmra.mrb[0].mxu0 %v153
    %v416 = vpop.f32.mrb[0].mxu0
    %v417 = vadd.f32 0.0, %v416
    %v418 = vpop.f32.mrb[0].mxu0
    %v419 = vadd.f32 0.0, %v418
    %420 = vmatprep.mubr.f32.mxu0 0.0
    %421 = vmatmul.mubr.f32.gmra.mrb[0].mxu0 %v156
    %v422 = vpop.f32.mrb[0].mxu0
    %v423 = vadd.f32 0.0, %v422
    %v424 = vpop.f32.mrb[0].mxu0
    %v425 = vadd.f32 0.0, %v424
    %426 = vdwg.mxu0
    %v427 = vlaneseq
    %v428 = vshrl.u32 %v427, 7
    %v429 = vadd.s32 %v428, 8
    %v430 = vadd.s32 %v428, 16
    %v431 = vadd.s32 %v428, 24
    %v432 = vadd.s32 %v428, 32
    %v433 = vadd.s32 %v428, 40
    %v434 = vadd.s32 %v428, 48
    %v435 = vadd.s32 %v428, 56
    %v436 = vadd.s32 %v428, 64
    %v437 = vadd.s32 %v428, 72
    %v438 = vadd.s32 %v428, 80
    %v439 = vadd.s32 %v428, 88
    %v440 = vadd.s32 %v428, 96
    %v441 = vadd.s32 %v428, 104
    %v442 = vadd.s32 %v428, 112
    %v443 = vadd.s32 %v428, 120
    %v444 = vadd.s32 %v428, 128
    %v445 = vadd.s32 %v428, 136
    %s446 = smul.u32 0, 144
    %v447 = vstv %s446
    %v448 = vadd.s32 %v428, %v447
    %v449 = vadd.s32 %v429, %v447
    %v450 = vadd.s32 %v430, %v447
    %v451 = vadd.s32 %v431, %v447
    %v452 = vadd.s32 %v432, %v447
    %v453 = vadd.s32 %v433, %v447
    %v454 = vadd.s32 %v434, %v447
    %v455 = vadd.s32 %v435, %v447
    %v456 = vadd.s32 %v436, %v447
    %v457 = vadd.s32 %v437, %v447
    %v458 = vadd.s32 %v438, %v447
    %v459 = vadd.s32 %v439, %v447
    %v460 = vadd.s32 %v440, %v447
    %v461 = vadd.s32 %v441, %v447
    %v462 = vadd.s32 %v442, %v447
    %v463 = vadd.s32 %v443, %v447
    %v464 = vadd.s32 %v444, %v447
    %v465 = vadd.s32 %v445, %v447
    %v466 = vlaneseq
    %v467 = vand.u32 %v466, 127
    %v468 = vadd.s32 %v467, 128
    %s469 = smul.u32 0, 256
    %v470 = vstv %s469
    %v471 = vadd.s32 %v467, %v470
    %v472 = vadd.s32 %v468, %v470
    %vm473 = vcmp.eq.s32.totalorder %v448, %v471
    %vm474 = vcmp.eq.s32.totalorder %v448, %v472
    %vm475 = vcmp.eq.s32.totalorder %v449, %v471
    %vm476 = vcmp.eq.s32.totalorder %v449, %v472
    %vm477 = vcmp.eq.s32.totalorder %v450, %v471
    %vm478 = vcmp.eq.s32.totalorder %v450, %v472
    %vm479 = vcmp.eq.s32.totalorder %v451, %v471
    %vm480 = vcmp.eq.s32.totalorder %v451, %v472
    %vm481 = vcmp.eq.s32.totalorder %v452, %v471
    %vm482 = vcmp.eq.s32.totalorder %v452, %v472
    %vm483 = vcmp.eq.s32.totalorder %v453, %v471
    %vm484 = vcmp.eq.s32.totalorder %v453, %v472
    %vm485 = vcmp.eq.s32.totalorder %v454, %v471
    %vm486 = vcmp.eq.s32.totalorder %v454, %v472
    %vm487 = vcmp.eq.s32.totalorder %v455, %v471
    %vm488 = vcmp.eq.s32.totalorder %v455, %v472
    %vm489 = vcmp.eq.s32.totalorder %v456, %v471
    %vm490 = vcmp.eq.s32.totalorder %v456, %v472
    %vm491 = vcmp.eq.s32.totalorder %v457, %v471
    %vm492 = vcmp.eq.s32.totalorder %v457, %v472
    %vm493 = vcmp.eq.s32.totalorder %v458, %v471
    %vm494 = vcmp.eq.s32.totalorder %v458, %v472
    %vm495 = vcmp.eq.s32.totalorder %v459, %v471
    %vm496 = vcmp.eq.s32.totalorder %v459, %v472
    %vm497 = vcmp.eq.s32.totalorder %v460, %v471
    %vm498 = vcmp.eq.s32.totalorder %v460, %v472
    %vm499 = vcmp.eq.s32.totalorder %v461, %v471
    %vm500 = vcmp.eq.s32.totalorder %v461, %v472
    %vm501 = vcmp.eq.s32.totalorder %v462, %v471
    %vm502 = vcmp.eq.s32.totalorder %v462, %v472
    %vm503 = vcmp.eq.s32.totalorder %v463, %v471
    %vm504 = vcmp.eq.s32.totalorder %v463, %v472
    %vm505 = vcmp.eq.s32.totalorder %v464, %v471
    %vm506 = vcmp.eq.s32.totalorder %v464, %v472
    %vm507 = vcmp.eq.s32.totalorder %v465, %v471
    %vm508 = vcmp.eq.s32.totalorder %v465, %v472
    %vm509 = vcmp.ge.s32.totalorder %v471, 144
    %vm510 = vcmp.ge.s32.totalorder %v472, 144
    %v511 = vmul.f32 %v321, 1.442695
    %v512 = vpow.pop %v511
    %v513 = vmul.f32 %v323, 1.442695
    %v514 = vpow.pop %v513
    %v515 = vmul.f32 %v327, 1.442695
    %v516 = vpow.pop %v515
    %v517 = vmul.f32 %v329, 1.442695
    %v518 = vpow.pop %v517
    %v519 = vmul.f32 %v333, 1.442695
    %v520 = vpow.pop %v519
    %v521 = vmul.f32 %v335, 1.442695
    %v522 = vpow.pop %v521
    %v523 = vmul.f32 %v339, 1.442695
    %v524 = vpow.pop %v523
    %v525 = vmul.f32 %v341, 1.442695
    %v526 = vpow.pop %v525
    %v527 = vmul.f32 %v345, 1.442695
    %v528 = vpow.pop %v527
    %v529 = vmul.f32 %v347, 1.442695
    %v530 = vpow.pop %v529
    %v531 = vmul.f32 %v351, 1.442695
    %v532 = vpow.pop %v531
    %v533 = vmul.f32 %v353, 1.442695
    %v534 = vpow.pop %v533
    %v535 = vmul.f32 %v357, 1.442695
    %v536 = vpow.pop %v535
    %v537 = vmul.f32 %v359, 1.442695
    %v538 = vpow.pop %v537
    %v539 = vmul.f32 %v363, 1.442695
    %v540 = vpow.pop %v539
    %v541 = vmul.f32 %v365, 1.442695
    %v542 = vpow.pop %v541
    %v543 = vmul.f32 %v369, 1.442695
    %v544 = vpow.pop %v543
    %v545 = vmul.f32 %v371, 1.442695
    %v546 = vpow.pop %v545
    %v547 = vmul.f32 %v375, 1.442695
    %v548 = vpow.pop %v547
    %v549 = vmul.f32 %v377, 1.442695
    %v550 = vpow.pop %v549
    %v551 = vmul.f32 %v381, 1.442695
    %v552 = vpow.pop %v551
    %v553 = vmul.f32 %v383, 1.442695
    %v554 = vpow.pop %v553
    %v555 = vmul.f32 %v387, 1.442695
    %v556 = vpow.pop %v555
    %v557 = vmul.f32 %v389, 1.442695
    %v558 = vpow.pop %v557
    %v559 = vmul.f32 %v393, 1.442695
    %v560 = vpow.pop %v559
    %v561 = vmul.f32 %v395, 1.442695
    %v562 = vpow.pop %v561
    %v563 = vmul.f32 %v399, 1.442695
    %v564 = vpow.pop %v563
    %v565 = vmul.f32 %v401, 1.442695
    %v566 = vpow.pop %v565
    %v567 = vmul.f32 %v405, 1.442695
    %v568 = vpow.pop %v567
    %v569 = vmul.f32 %v407, 1.442695
    %v570 = vpow.pop %v569
    %v571 = vmul.f32 %v411, 1.442695
    %v572 = vpow.pop %v571
    %v573 = vmul.f32 %v413, 1.442695
    %v574 = vpow.pop %v573
    %v575 = vmul.f32 %v417, 1.442695
    %v576 = vpow.pop %v575
    %v577 = vmul.f32 %v419, 1.442695
    %v578 = vpow.pop %v577
    %v579 = vmul.f32 %v423, 1.442695
    %v580 = vpow.pop %v579
    %v581 = vmul.f32 %v425, 1.442695
    %v582 = vpow.pop %v581
    %vm583 = vmor %vm473, %vm509
    %vm584 = vmor %vm474, %vm510
    %vm585 = vmor %vm475, %vm509
    %vm586 = vmor %vm476, %vm510
    %vm587 = vmor %vm477, %vm509
    %vm588 = vmor %vm478, %vm510
    %vm589 = vmor %vm479, %vm509
    %vm590 = vmor %vm480, %vm510
    %vm591 = vmor %vm481, %vm509
    %vm592 = vmor %vm482, %vm510
    %vm593 = vmor %vm483, %vm509
    %vm594 = vmor %vm484, %vm510
    %vm595 = vmor %vm485, %vm509
    %vm596 = vmor %vm486, %vm510
    %vm597 = vmor %vm487, %vm509
    %vm598 = vmor %vm488, %vm510
    %vm599 = vmor %vm489, %vm509
    %vm600 = vmor %vm490, %vm510
    %vm601 = vmor %vm491, %vm509
    %vm602 = vmor %vm492, %vm510
    %vm603 = vmor %vm493, %vm509
    %vm604 = vmor %vm494, %vm510
    %vm605 = vmor %vm495, %vm509
    %vm606 = vmor %vm496, %vm510
    %vm607 = vmor %vm497, %vm509
    %vm608 = vmor %vm498, %vm510
    %vm609 = vmor %vm499, %vm509
    %vm610 = vmor %vm500, %vm510
    %vm611 = vmor %vm501, %vm509
    %vm612 = vmor %vm502, %vm510
    %vm613 = vmor %vm503, %vm509
    %vm614 = vmor %vm504, %vm510
    %vm615 = vmor %vm505, %vm509
    %vm616 = vmor %vm506, %vm510
    %vm617 = vmor %vm507, %vm509
    %vm618 = vmor %vm508, %vm510
    %v619 = vsel %vm583, 0.0, %v512
    %v620 = vsel %vm584, 0.0, %v514
    %v621 = vsel %vm585, 0.0, %v516
    %v622 = vsel %vm586, 0.0, %v518
    %v623 = vsel %vm587, 0.0, %v520
    %v624 = vsel %vm588, 0.0, %v522
    %v625 = vsel %vm589, 0.0, %v524
    %v626 = vsel %vm590, 0.0, %v526
    %v627 = vsel %vm591, 0.0, %v528
    %v628 = vsel %vm592, 0.0, %v530
    %v629 = vsel %vm593, 0.0, %v532
    %v630 = vsel %vm594, 0.0, %v534
    %v631 = vsel %vm595, 0.0, %v536
    %v632 = vsel %vm596, 0.0, %v538
    %v633 = vsel %vm597, 0.0, %v540
    %v634 = vsel %vm598, 0.0, %v542
    %v635 = vsel %vm599, 0.0, %v544
    %v636 = vsel %vm600, 0.0, %v546
    %v637 = vsel %vm601, 0.0, %v548
    %v638 = vsel %vm602, 0.0, %v550
    %v639 = vsel %vm603, 0.0, %v552
    %v640 = vsel %vm604, 0.0, %v554
    %v641 = vsel %vm605, 0.0, %v556
    %v642 = vsel %vm606, 0.0, %v558
    %v643 = vsel %vm607, 0.0, %v560
    %v644 = vsel %vm608, 0.0, %v562
    %v645 = vsel %vm609, 0.0, %v564
    %v646 = vsel %vm610, 0.0, %v566
    %v647 = vsel %vm611, 0.0, %v568
    %v648 = vsel %vm612, 0.0, %v570
    %v649 = vsel %vm613, 0.0, %v572
    %v650 = vsel %vm614, 0.0, %v574
    %v651 = vsel %vm615, 0.0, %v576
    %v652 = vsel %vm616, 0.0, %v578
    %v653 = vsel %vm617, 0.0, %v580
    %v654 = vsel %vm618, 0.0, %v582
    %v655 = vld [vmem:[#allocation3] sm:$0xff]
    %v656 = vld [vmem:[#allocation3 + $0x8] sm:$0xff]
    %v657 = vld [vmem:[#allocation3 + $0x10] sm:$0xff]
    %v658 = vld [vmem:[#allocation3 + $0x18] sm:$0xff]
    %v659 = vld [vmem:[#allocation3 + $0x20] sm:$0xff]
    %v660 = vld [vmem:[#allocation3 + $0x28] sm:$0xff]
    %v661 = vld [vmem:[#allocation3 + $0x30] sm:$0xff]
    %v662 = vld [vmem:[#allocation3 + $0x38] sm:$0xff]
    %v663 = vld [vmem:[#allocation3 + $0x40] sm:$0xff]
    %v664 = vld [vmem:[#allocation3 + $0x48] sm:$0xff]
    %v665 = vld [vmem:[#allocation3 + $0x50] sm:$0xff]
    %v666 = vld [vmem:[#allocation3 + $0x58] sm:$0xff]
    %v667 = vld [vmem:[#allocation3 + $0x60] sm:$0xff]
    %v668 = vld [vmem:[#allocation3 + $0x68] sm:$0xff]
    %v669 = vld [vmem:[#allocation3 + $0x70] sm:$0xff]
    %v670 = vld [vmem:[#allocation3 + $0x78] sm:$0xff]
    %v671 = vld [vmem:[#allocation3 + $0x80] sm:$0xff]
    %v672 = vld [vmem:[#allocation3 + $0x88] sm:$0xff]
    %v673 = vadd.f32 %v619, %v620
    %674 = vadd.xlane.f32.xlu0 %v673
    %v675 = vpop.xlane.xlu0 %674
    %v676 = vadd.f32 %v621, %v622
    %677 = vadd.xlane.f32.xlu0 %v676
    %v678 = vpop.xlane.xlu0 %677
    %v679 = vadd.f32 %v623, %v624
    %680 = vadd.xlane.f32.xlu0 %v679
    %v681 = vpop.xlane.xlu0 %680
    %v682 = vadd.f32 %v625, %v626
    %683 = vadd.xlane.f32.xlu0 %v682
    %v684 = vpop.xlane.xlu0 %683
    %v685 = vadd.f32 %v627, %v628
    %686 = vadd.xlane.f32.xlu0 %v685
    %v687 = vpop.xlane.xlu0 %686
    %v688 = vadd.f32 %v629, %v630
    %689 = vadd.xlane.f32.xlu0 %v688
    %v690 = vpop.xlane.xlu0 %689
    %v691 = vadd.f32 %v631, %v632
    %692 = vadd.xlane.f32.xlu0 %v691
    %v693 = vpop.xlane.xlu0 %692
    %v694 = vadd.f32 %v633, %v634
    %695 = vadd.xlane.f32.xlu0 %v694
    %v696 = vpop.xlane.xlu0 %695
    %v697 = vadd.f32 %v635, %v636
    %698 = vadd.xlane.f32.xlu0 %v697
    %v699 = vpop.xlane.xlu0 %698
    %v700 = vadd.f32 %v637, %v638
    %701 = vadd.xlane.f32.xlu0 %v700
    %v702 = vpop.xlane.xlu0 %701
    %v703 = vadd.f32 %v639, %v640
    %704 = vadd.xlane.f32.xlu0 %v703
    %v705 = vpop.xlane.xlu0 %704
    %v706 = vadd.f32 %v641, %v642
    %707 = vadd.xlane.f32.xlu0 %v706
    %v708 = vpop.xlane.xlu0 %707
    %v709 = vadd.f32 %v643, %v644
    %710 = vadd.xlane.f32.xlu0 %v709
    %v711 = vpop.xlane.xlu0 %710
    %v712 = vadd.f32 %v645, %v646
    %713 = vadd.xlane.f32.xlu0 %v712
    %v714 = vpop.xlane.xlu0 %713
    %v715 = vadd.f32 %v647, %v648
    %716 = vadd.xlane.f32.xlu0 %v715
    %v717 = vpop.xlane.xlu0 %716
    %v718 = vadd.f32 %v649, %v650
    %719 = vadd.xlane.f32.xlu0 %v718
    %v720 = vpop.xlane.xlu0 %719
    %v721 = vadd.f32 %v651, %v652
    %722 = vadd.xlane.f32.xlu0 %v721
    %v723 = vpop.xlane.xlu0 %722
    %v724 = vadd.f32 %v653, %v654
    %725 = vadd.xlane.f32.xlu0 %v724
    %v726 = vpop.xlane.xlu0 %725
    %v727 = vadd.f32 %v655, %v675
    %v728 = vadd.f32 %v656, %v678
    %v729 = vadd.f32 %v657, %v681
    %v730 = vadd.f32 %v658, %v684
    %v731 = vadd.f32 %v659, %v687
    %v732 = vadd.f32 %v660, %v690
    %v733 = vadd.f32 %v661, %v693
    %v734 = vadd.f32 %v662, %v696
    %v735 = vadd.f32 %v663, %v699
    %v736 = vadd.f32 %v664, %v702
    %v737 = vadd.f32 %v665, %v705
    %v738 = vadd.f32 %v666, %v708
    %v739 = vadd.f32 %v667, %v711
    %v740 = vadd.f32 %v668, %v714
    %v741 = vadd.f32 %v669, %v717
    %v742 = vadd.f32 %v670, %v720
    %v743 = vadd.f32 %v671, %v723
    %v744 = vadd.f32 %v672, %v726
    %vm745 = vcmask 7168
    %746 = vst.msk [vmem:[#allocation3] sm:$0xff] %vm745, %v727
    %747 = vst.msk [vmem:[#allocation3 + $0x8] sm:$0xff] %vm745, %v728
    %748 = vst.msk [vmem:[#allocation3 + $0x10] sm:$0xff] %vm745, %v729
    %749 = vst.msk [vmem:[#allocation3 + $0x18] sm:$0xff] %vm745, %v730
    %750 = vst.msk [vmem:[#allocation3 + $0x20] sm:$0xff] %vm745, %v731
    %751 = vst.msk [vmem:[#allocation3 + $0x28] sm:$0xff] %vm745, %v732
    %752 = vst.msk [vmem:[#allocation3 + $0x30] sm:$0xff] %vm745, %v733
    %753 = vst.msk [vmem:[#allocation3 + $0x38] sm:$0xff] %vm745, %v734
    %754 = vst.msk [vmem:[#allocation3 + $0x40] sm:$0xff] %vm745, %v735
    %755 = vst.msk [vmem:[#allocation3 + $0x48] sm:$0xff] %vm745, %v736
    %756 = vst.msk [vmem:[#allocation3 + $0x50] sm:$0xff] %vm745, %v737
    %757 = vst.msk [vmem:[#allocation3 + $0x58] sm:$0xff] %vm745, %v738
    %758 = vst.msk [vmem:[#allocation3 + $0x60] sm:$0xff] %vm745, %v739
    %759 = vst.msk [vmem:[#allocation3 + $0x68] sm:$0xff] %vm745, %v740
    %760 = vst.msk [vmem:[#allocation3 + $0x70] sm:$0xff] %vm745, %v741
    %761 = vst.msk [vmem:[#allocation3 + $0x78] sm:$0xff] %vm745, %v742
    %762 = vst.msk [vmem:[#allocation3 + $0x80] sm:$0xff] %vm745, %v743
    %763 = vst.msk [vmem:[#allocation3 + $0x88] sm:$0xff] %vm745, %v744
    %vm764 = vcmp.lt.s32.totalorder %v448, 72
    %vm765 = vcmp.lt.s32.totalorder %v449, 72
    %vm766 = vcmp.lt.s32.totalorder %v450, 72
    %vm767 = vcmp.lt.s32.totalorder %v451, 72
    %vm768 = vcmp.lt.s32.totalorder %v452, 72
    %vm769 = vcmp.lt.s32.totalorder %v453, 72
    %vm770 = vcmp.lt.s32.totalorder %v454, 72
    %vm771 = vcmp.lt.s32.totalorder %v455, 72
    %vm772 = vcmp.lt.s32.totalorder %v456, 72
    %vm773 = vcmp.lt.s32.totalorder %v457, 72
    %vm774 = vcmp.lt.s32.totalorder %v458, 72
    %vm775 = vcmp.lt.s32.totalorder %v459, 72
    %vm776 = vcmp.lt.s32.totalorder %v460, 72
    %vm777 = vcmp.lt.s32.totalorder %v461, 72
    %vm778 = vcmp.lt.s32.totalorder %v462, 72
    %vm779 = vcmp.lt.s32.totalorder %v463, 72
    %vm780 = vcmp.lt.s32.totalorder %v464, 72
    %vm781 = vcmp.lt.s32.totalorder %v465, 72
    %v782 = vsub.s32 %v448, 72
    %v783 = vsub.s32 %v449, 72
    %v784 = vsub.s32 %v450, 72
    %v785 = vsub.s32 %v451, 72
    %v786 = vsub.s32 %v452, 72
    %v787 = vsub.s32 %v453, 72
    %v788 = vsub.s32 %v454, 72
    %v789 = vsub.s32 %v455, 72
    %v790 = vsub.s32 %v456, 72
    %v791 = vsub.s32 %v457, 72
    %v792 = vsub.s32 %v458, 72
    %v793 = vsub.s32 %v459, 72
    %v794 = vsub.s32 %v460, 72
    %v795 = vsub.s32 %v461, 72
    %v796 = vsub.s32 %v462, 72
    %v797 = vsub.s32 %v463, 72
    %v798 = vsub.s32 %v464, 72
    %v799 = vsub.s32 %v465, 72
    %v800 = vsel %vm764, %v448, %v782
    %v801 = vsel %vm765, %v449, %v783
    %v802 = vsel %vm766, %v450, %v784
    %v803 = vsel %vm767, %v451, %v785
    %v804 = vsel %vm768, %v452, %v786
    %v805 = vsel %vm769, %v453, %v787
    %v806 = vsel %vm770, %v454, %v788
    %v807 = vsel %vm771, %v455, %v789
    %v808 = vsel %vm772, %v456, %v790
    %v809 = vsel %vm773, %v457, %v791
    %v810 = vsel %vm774, %v458, %v792
    %v811 = vsel %vm775, %v459, %v793
    %v812 = vsel %vm776, %v460, %v794
    %v813 = vsel %vm777, %v461, %v795
    %v814 = vsel %vm778, %v462, %v796
    %v815 = vsel %vm779, %v463, %v797
    %v816 = vsel %vm780, %v464, %v798
    %v817 = vsel %vm781, %v465, %v799
    %v818 = vld [vmem:[#allocation4] sm:$0xff]
    %v819 = vld [vmem:[#allocation4 + $0x8] sm:$0xff]
    %v820 = vld [vmem:[#allocation4 + $0x10] sm:$0xff]
    %v821 = vld [vmem:[#allocation4 + $0x18] sm:$0xff]
    %v822 = vld [vmem:[#allocation4 + $0x20] sm:$0xff]
    %v823 = vld [vmem:[#allocation4 + $0x28] sm:$0xff]
    %v824 = vld [vmem:[#allocation4 + $0x30] sm:$0xff]
    %v825 = vld [vmem:[#allocation4 + $0x38] sm:$0xff]
    %v826 = vld [vmem:[#allocation4 + $0x40] sm:$0xff]
    %v827 = vld [vmem:[#allocation4 + $0x48] sm:$0xff]
    %v828 = vld [vmem:[#allocation4 + $0x50] sm:$0xff]
    %v829 = vld [vmem:[#allocation4 + $0x58] sm:$0xff]
    %v830 = vld [vmem:[#allocation4 + $0x60] sm:$0xff]
    %v831 = vld [vmem:[#allocation4 + $0x68] sm:$0xff]
    %v832 = vld [vmem:[#allocation4 + $0x70] sm:$0xff]
    %v833 = vld [vmem:[#allocation4 + $0x78] sm:$0xff]
    %v834 = vld [vmem:[#allocation4 + $0x80] sm:$0xff]
    %v835 = vld [vmem:[#allocation4 + $0x88] sm:$0xff]
    %vm836 = vcmp.eq.s32.totalorder %v471, %v800
    %vm837 = vcmp.eq.s32.totalorder %v472, %v800
    %vm838 = vcmp.eq.s32.totalorder %v471, %v801
    %vm839 = vcmp.eq.s32.totalorder %v472, %v801
    %vm840 = vcmp.eq.s32.totalorder %v471, %v802
    %vm841 = vcmp.eq.s32.totalorder %v472, %v802
    %vm842 = vcmp.eq.s32.totalorder %v471, %v803
    %vm843 = vcmp.eq.s32.totalorder %v472, %v803
    %vm844 = vcmp.eq.s32.totalorder %v471, %v804
    %vm845 = vcmp.eq.s32.totalorder %v472, %v804
    %vm846 = vcmp.eq.s32.totalorder %v471, %v805
    %vm847 = vcmp.eq.s32.totalorder %v472, %v805
    %vm848 = vcmp.eq.s32.totalorder %v471, %v806
    %vm849 = vcmp.eq.s32.totalorder %v472, %v806
    %vm850 = vcmp.eq.s32.totalorder %v471, %v807
    %vm851 = vcmp.eq.s32.totalorder %v472, %v807
    %vm852 = vcmp.eq.s32.totalorder %v471, %v808
    %vm853 = vcmp.eq.s32.totalorder %v472, %v808
    %vm854 = vcmp.eq.s32.totalorder %v471, %v809
    %vm855 = vcmp.eq.s32.totalorder %v472, %v809
    %vm856 = vcmp.eq.s32.totalorder %v471, %v810
    %vm857 = vcmp.eq.s32.totalorder %v472, %v810
    %vm858 = vcmp.eq.s32.totalorder %v471, %v811
    %vm859 = vcmp.eq.s32.totalorder %v472, %v811
    %vm860 = vcmp.eq.s32.totalorder %v471, %v812
    %vm861 = vcmp.eq.s32.totalorder %v472, %v812
    %vm862 = vcmp.eq.s32.totalorder %v471, %v813
    %vm863 = vcmp.eq.s32.totalorder %v472, %v813
    %vm864 = vcmp.eq.s32.totalorder %v471, %v814
    %vm865 = vcmp.eq.s32.totalorder %v472, %v814
    %vm866 = vcmp.eq.s32.totalorder %v471, %v815
    %vm867 = vcmp.eq.s32.totalorder %v472, %v815
    %vm868 = vcmp.eq.s32.totalorder %v471, %v816
    %vm869 = vcmp.eq.s32.totalorder %v472, %v816
    %vm870 = vcmp.eq.s32.totalorder %v471, %v817
    %vm871 = vcmp.eq.s32.totalorder %v472, %v817
    %v872 = vsel %vm836, %v619, 0.0
    %v873 = vsel %vm837, %v620, 0.0
    %v874 = vsel %vm838, %v621, 0.0
    %v875 = vsel %vm839, %v622, 0.0
    %v876 = vsel %vm840, %v623, 0.0
    %v877 = vsel %vm841, %v624, 0.0
    %v878 = vsel %vm842, %v625, 0.0
    %v879 = vsel %vm843, %v626, 0.0
    %v880 = vsel %vm844, %v627, 0.0
    %v881 = vsel %vm845, %v628, 0.0
    %v882 = vsel %vm846, %v629, 0.0
    %v883 = vsel %vm847, %v630, 0.0
    %v884 = vsel %vm848, %v631, 0.0
    %v885 = vsel %vm849, %v632, 0.0
    %v886 = vsel %vm850, %v633, 0.0
    %v887 = vsel %vm851, %v634, 0.0
    %v888 = vsel %vm852, %v635, 0.0
    %v889 = vsel %vm853, %v636, 0.0
    %v890 = vsel %vm854, %v637, 0.0
    %v891 = vsel %vm855, %v638, 0.0
    %v892 = vsel %vm856, %v639, 0.0
    %v893 = vsel %vm857, %v640, 0.0
    %v894 = vsel %vm858, %v641, 0.0
    %v895 = vsel %vm859, %v642, 0.0
    %v896 = vsel %vm860, %v643, 0.0
    %v897 = vsel %vm861, %v644, 0.0
    %v898 = vsel %vm862, %v645, 0.0
    %v899 = vsel %vm863, %v646, 0.0
    %v900 = vsel %vm864, %v647, 0.0
    %v901 = vsel %vm865, %v648, 0.0
    %v902 = vsel %vm866, %v649, 0.0
    %v903 = vsel %vm867, %v650, 0.0
    %v904 = vsel %vm868, %v651, 0.0
    %v905 = vsel %vm869, %v652, 0.0
    %v906 = vsel %vm870, %v653, 0.0
    %v907 = vsel %vm871, %v654, 0.0
    %v908 = vadd.f32 %v872, %v873
    %909 = vadd.xlane.f32.xlu0 %v908
    %v910 = vpop.xlane.xlu0 %909
    %v911 = vadd.f32 %v874, %v875
    %912 = vadd.xlane.f32.xlu0 %v911
    %v913 = vpop.xlane.xlu0 %912
    %v914 = vadd.f32 %v876, %v877
    %915 = vadd.xlane.f32.xlu0 %v914
    %v916 = vpop.xlane.xlu0 %915
    %v917 = vadd.f32 %v878, %v879
    %918 = vadd.xlane.f32.xlu0 %v917
    %v919 = vpop.xlane.xlu0 %918
    %v920 = vadd.f32 %v880, %v881
    %921 = vadd.xlane.f32.xlu0 %v920
    %v922 = vpop.xlane.xlu0 %921
    %v923 = vadd.f32 %v882, %v883
    %924 = vadd.xlane.f32.xlu0 %v923
    %v925 = vpop.xlane.xlu0 %924
    %v926 = vadd.f32 %v884, %v885
    %927 = vadd.xlane.f32.xlu0 %v926
    %v928 = vpop.xlane.xlu0 %927
    %v929 = vadd.f32 %v886, %v887
    %930 = vadd.xlane.f32.xlu0 %v929
    %v931 = vpop.xlane.xlu0 %930
    %v932 = vadd.f32 %v888, %v889
    %933 = vadd.xlane.f32.xlu0 %v932
    %v934 = vpop.xlane.xlu0 %933
    %v935 = vadd.f32 %v890, %v891
    %936 = vadd.xlane.f32.xlu0 %v935
    %v937 = vpop.xlane.xlu0 %936
    %v938 = vadd.f32 %v892, %v893
    %939 = vadd.xlane.f32.xlu0 %v938
    %v940 = vpop.xlane.xlu0 %939
    %v941 = vadd.f32 %v894, %v895
    %942 = vadd.xlane.f32.xlu0 %v941
    %v943 = vpop.xlane.xlu0 %942
    %v944 = vadd.f32 %v896, %v897
    %945 = vadd.xlane.f32.xlu0 %v944
    %v946 = vpop.xlane.xlu0 %945
    %v947 = vadd.f32 %v898, %v899
    %948 = vadd.xlane.f32.xlu0 %v947
    %v949 = vpop.xlane.xlu0 %948
    %v950 = vadd.f32 %v900, %v901
    %951 = vadd.xlane.f32.xlu0 %v950
    %v952 = vpop.xlane.xlu0 %951
    %v953 = vadd.f32 %v902, %v903
    %954 = vadd.xlane.f32.xlu0 %v953
    %v955 = vpop.xlane.xlu0 %954
    %v956 = vadd.f32 %v904, %v905
    %957 = vadd.xlane.f32.xlu0 %v956
    %v958 = vpop.xlane.xlu0 %957
    %v959 = vadd.f32 %v906, %v907
    %960 = vadd.xlane.f32.xlu0 %v959
    %v961 = vpop.xlane.xlu0 %960
    %v962 = vadd.f32 %v818, %v910
    %v963 = vadd.f32 %v819, %v913
    %v964 = vadd.f32 %v820, %v916
    %v965 = vadd.f32 %v821, %v919
    %v966 = vadd.f32 %v822, %v922
    %v967 = vadd.f32 %v823, %v925
    %v968 = vadd.f32 %v824, %v928
    %v969 = vadd.f32 %v825, %v931
    %v970 = vadd.f32 %v826, %v934
    %v971 = vadd.f32 %v827, %v937
    %v972 = vadd.f32 %v828, %v940
    %v973 = vadd.f32 %v829, %v943
    %v974 = vadd.f32 %v830, %v946
    %v975 = vadd.f32 %v831, %v949
    %v976 = vadd.f32 %v832, %v952
    %v977 = vadd.f32 %v833, %v955
    %v978 = vadd.f32 %v834, %v958
    %v979 = vadd.f32 %v835, %v961
    %980 = vst.msk [vmem:[#allocation4] sm:$0xff] %vm745, %v962
    %981 = vst.msk [vmem:[#allocation4 + $0x8] sm:$0xff] %vm745, %v963
    %982 = vst.msk [vmem:[#allocation4 + $0x10] sm:$0xff] %vm745, %v964
    %983 = vst.msk [vmem:[#allocation4 + $0x18] sm:$0xff] %vm745, %v965
    %984 = vst.msk [vmem:[#allocation4 + $0x20] sm:$0xff] %vm745, %v966
    %985 = vst.msk [vmem:[#allocation4 + $0x28] sm:$0xff] %vm745, %v967
    %986 = vst.msk [vmem:[#allocation4 + $0x30] sm:$0xff] %vm745, %v968
    %987 = vst.msk [vmem:[#allocation4 + $0x38] sm:$0xff] %vm745, %v969
    %988 = vst.msk [vmem:[#allocation4 + $0x40] sm:$0xff] %vm745, %v970
    %989 = vst.msk [vmem:[#allocation4 + $0x48] sm:$0xff] %vm745, %v971
    %990 = vst.msk [vmem:[#allocation4 + $0x50] sm:$0xff] %vm745, %v972
    %991 = vst.msk [vmem:[#allocation4 + $0x58] sm:$0xff] %vm745, %v973
    %992 = vst.msk [vmem:[#allocation4 + $0x60] sm:$0xff] %vm745, %v974
    %993 = vst.msk [vmem:[#allocation4 + $0x68] sm:$0xff] %vm745, %v975
    %994 = vst.msk [vmem:[#allocation4 + $0x70] sm:$0xff] %vm745, %v976
    %995 = vst.msk [vmem:[#allocation4 + $0x78] sm:$0xff] %vm745, %v977
    %996 = vst.msk [vmem:[#allocation4 + $0x80] sm:$0xff] %vm745, %v978
    %997 = vst.msk [vmem:[#allocation4 + $0x88] sm:$0xff] %vm745, %v979
    %v998 = vsel %vm473, 0.0, %v512
    %v999 = vsel %vm474, 0.0, %v514
    %v1000 = vsel %vm475, 0.0, %v516
    %v1001 = vsel %vm476, 0.0, %v518
    %v1002 = vsel %vm477, 0.0, %v520
    %v1003 = vsel %vm478, 0.0, %v522
    %v1004 = vsel %vm479, 0.0, %v524
    %v1005 = vsel %vm480, 0.0, %v526
    %v1006 = vsel %vm481, 0.0, %v528
    %v1007 = vsel %vm482, 0.0, %v530
    %v1008 = vsel %vm483, 0.0, %v532
    %v1009 = vsel %vm484, 0.0, %v534
    %v1010 = vsel %vm485, 0.0, %v536
    %v1011 = vsel %vm486, 0.0, %v538
    %v1012 = vsel %vm487, 0.0, %v540
    %v1013 = vsel %vm488, 0.0, %v542
    %v1014 = vsel %vm489, 0.0, %v544
    %v1015 = vsel %vm490, 0.0, %v546
    %v1016 = vsel %vm491, 0.0, %v548
    %v1017 = vsel %vm492, 0.0, %v550
    %v1018 = vsel %vm493, 0.0, %v552
    %v1019 = vsel %vm494, 0.0, %v554
    %v1020 = vsel %vm495, 0.0, %v556
    %v1021 = vsel %vm496, 0.0, %v558
    %v1022 = vsel %vm497, 0.0, %v560
    %v1023 = vsel %vm498, 0.0, %v562
    %v1024 = vsel %vm499, 0.0, %v564
    %v1025 = vsel %vm500, 0.0, %v566
    %v1026 = vsel %vm501, 0.0, %v568
    %v1027 = vsel %vm502, 0.0, %v570
    %v1028 = vsel %vm503, 0.0, %v572
    %v1029 = vsel %vm504, 0.0, %v574
    %v1030 = vsel %vm505, 0.0, %v576
    %v1031 = vsel %vm506, 0.0, %v578
    %v1032 = vsel %vm507, 0.0, %v580
    %v1033 = vsel %vm508, 0.0, %v582
    %v1034 = vsel %vm509, -inf, %v998
    %v1035 = vsel %vm510, -inf, %v999
    %v1036 = vsel %vm509, -inf, %v1000
    %v1037 = vsel %vm510, -inf, %v1001
    %v1038 = vsel %vm509, -inf, %v1002
    %v1039 = vsel %vm510, -inf, %v1003
    %v1040 = vsel %vm509, -inf, %v1004
    %v1041 = vsel %vm510, -inf, %v1005
    %v1042 = vsel %vm509, -inf, %v1006
    %v1043 = vsel %vm510, -inf, %v1007
    %v1044 = vsel %vm509, -inf, %v1008
    %v1045 = vsel %vm510, -inf, %v1009
    %v1046 = vsel %vm509, -inf, %v1010
    %v1047 = vsel %vm510, -inf, %v1011
    %v1048 = vsel %vm509, -inf, %v1012
    %v1049 = vsel %vm510, -inf, %v1013
    %v1050 = vsel %vm509, -inf, %v1014
    %v1051 = vsel %vm510, -inf, %v1015
    %v1052 = vsel %vm509, -inf, %v1016
    %v1053 = vsel %vm510, -inf, %v1017
    %v1054 = vsel %vm509, -inf, %v1018
    %v1055 = vsel %vm510, -inf, %v1019
    %v1056 = vsel %vm509, -inf, %v1020
    %v1057 = vsel %vm510, -inf, %v1021
    %v1058 = vsel %vm509, -inf, %v1022
    %v1059 = vsel %vm510, -inf, %v1023
    %v1060 = vsel %vm509, -inf, %v1024
    %v1061 = vsel %vm510, -inf, %v1025
    %v1062 = vsel %vm509, -inf, %v1026
    %v1063 = vsel %vm510, -inf, %v1027
    %v1064 = vsel %vm509, -inf, %v1028
    %v1065 = vsel %vm510, -inf, %v1029
    %v1066 = vsel %vm509, -inf, %v1030
    %v1067 = vsel %vm510, -inf, %v1031
    %v1068 = vsel %vm509, -inf, %v1032
    %v1069 = vsel %vm510, -inf, %v1033
    %s1070 = smul.u32 0, 36
    %s1071 = smul.addr %s1070, 8
    %s1072 = scalar_lea.vmem [#allocation2], %s1071
    %1073 = vst [vmem:[%s1072] sm:$0xff] %v1034
    %1074 = vst [vmem:[%s1072 + $0x8] sm:$0xff] %v1035
    %1075 = vst [vmem:[%s1072 + $0x10] sm:$0xff] %v1036
    %1076 = vst [vmem:[%s1072 + $0x18] sm:$0xff] %v1037
    %1077 = vst [vmem:[%s1072 + $0x20] sm:$0xff] %v1038
    %1078 = vst [vmem:[%s1072 + $0x28] sm:$0xff] %v1039
    %1079 = vst [vmem:[%s1072 + $0x30] sm:$0xff] %v1040
    %1080 = vst [vmem:[%s1072 + $0x38] sm:$0xff] %v1041
    %1081 = vst [vmem:[%s1072 + $0x40] sm:$0xff] %v1042
    %1082 = vst [vmem:[%s1072 + $0x48] sm:$0xff] %v1043
    %1083 = vst [vmem:[%s1072 + $0x50] sm:$0xff] %v1044
    %1084 = vst [vmem:[%s1072 + $0x58] sm:$0xff] %v1045
    %1085 = vst [vmem:[%s1072 + $0x60] sm:$0xff] %v1046
    %1086 = vst [vmem:[%s1072 + $0x68] sm:$0xff] %v1047
    %1087 = vst [vmem:[%s1072 + $0x70] sm:$0xff] %v1048
    %1088 = vst [vmem:[%s1072 + $0x78] sm:$0xff] %v1049
    %1089 = vst [vmem:[%s1072 + $0x80] sm:$0xff] %v1050
    %1090 = vst [vmem:[%s1072 + $0x88] sm:$0xff] %v1051
    %1091 = vst [vmem:[%s1072 + $0x90] sm:$0xff] %v1052
    %1092 = vst [vmem:[%s1072 + $0x98] sm:$0xff] %v1053
    %1093 = vst [vmem:[%s1072 + $0xa0] sm:$0xff] %v1054
    %1094 = vst [vmem:[%s1072 + $0xa8] sm:$0xff] %v1055
    %1095 = vst [vmem:[%s1072 + $0xb0] sm:$0xff] %v1056
    %1096 = vst [vmem:[%s1072 + $0xb8] sm:$0xff] %v1057
    %1097 = vst [vmem:[%s1072 + $0xc0] sm:$0xff] %v1058
    %1098 = vst [vmem:[%s1072 + $0xc8] sm:$0xff] %v1059
    %1099 = vst [vmem:[%s1072 + $0xd0] sm:$0xff] %v1060
    %1100 = vst [vmem:[%s1072 + $0xd8] sm:$0xff] %v1061
    %1101 = vst [vmem:[%s1072 + $0xe0] sm:$0xff] %v1062
    %1102 = vst [vmem:[%s1072 + $0xe8] sm:$0xff] %v1063
    %1103 = vst [vmem:[%s1072 + $0xf0] sm:$0xff] %v1064
    %1104 = vst [vmem:[%s1072 + $0xf8] sm:$0xff] %v1065
    %1105 = vst [vmem:[%s1072 + $0x100] sm:$0xff] %v1066
    %1106 = vst [vmem:[%s1072 + $0x108] sm:$0xff] %v1067
    %1107 = vst [vmem:[%s1072 + $0x110] sm:$0xff] %v1068
    %1108 = vst [vmem:[%s1072 + $0x118] sm:$0xff] %v1069
    // Predicated region
    $region14: #{tpu_custom_call.1} parent=1 // pred_check
      %p1109 = pneg %p12
    $region15: #{tpu_custom_call.1} parent=1 // pred_check_branch
      %1111 = sbr.rel (%p1109) target = $region17
    $region16: #{tpu_custom_call.1} parent=1 // pred_region
      %vm1112 = vcmp.lt.s32.totalorder %v448, 144
      %vm1113 = vcmp.lt.s32.totalorder %v449, 144
      %vm1114 = vcmp.lt.s32.totalorder %v450, 144
      %vm1115 = vcmp.lt.s32.totalorder %v451, 144
      %vm1116 = vcmp.lt.s32.totalorder %v452, 144
      %vm1117 = vcmp.lt.s32.totalorder %v453, 144
      %vm1118 = vcmp.lt.s32.totalorder %v454, 144
      %vm1119 = vcmp.lt.s32.totalorder %v455, 144
      %vm1120 = vcmp.lt.s32.totalorder %v456, 144
      %vm1121 = vcmp.lt.s32.totalorder %v457, 144
      %vm1122 = vcmp.lt.s32.totalorder %v458, 144
      %vm1123 = vcmp.lt.s32.totalorder %v459, 144
      %vm1124 = vcmp.lt.s32.totalorder %v460, 144
      %vm1125 = vcmp.lt.s32.totalorder %v461, 144
      %vm1126 = vcmp.lt.s32.totalorder %v462, 144
      %vm1127 = vcmp.lt.s32.totalorder %v463, 144
      %vm1128 = vcmp.lt.s32.totalorder %v464, 144
      %vm1129 = vcmp.lt.s32.totalorder %v465, 144
      %v1130 = vld [vmem:[#allocation3] sm:$0xff]
      %v1131 = vld [vmem:[#allocation3 + $0x8] sm:$0xff]
      %v1132 = vld [vmem:[#allocation3 + $0x10] sm:$0xff]
      %v1133 = vld [vmem:[#allocation3 + $0x18] sm:$0xff]
      %v1134 = vld [vmem:[#allocation3 + $0x20] sm:$0xff]
      %v1135 = vld [vmem:[#allocation3 + $0x28] sm:$0xff]
      %v1136 = vld [vmem:[#allocation3 + $0x30] sm:$0xff]
      %v1137 = vld [vmem:[#allocation3 + $0x38] sm:$0xff]
      %v1138 = vld [vmem:[#allocation3 + $0x40] sm:$0xff]
      %v1139 = vld [vmem:[#allocation3 + $0x48] sm:$0xff]
      %v1140 = vld [vmem:[#allocation3 + $0x50] sm:$0xff]
      %v1141 = vld [vmem:[#allocation3 + $0x58] sm:$0xff]
      %v1142 = vld [vmem:[#allocation3 + $0x60] sm:$0xff]
      %v1143 = vld [vmem:[#allocation3 + $0x68] sm:$0xff]
      %v1144 = vld [vmem:[#allocation3 + $0x70] sm:$0xff]
      %v1145 = vld [vmem:[#allocation3 + $0x78] sm:$0xff]
      %v1146 = vld [vmem:[#allocation3 + $0x80] sm:$0xff]
      %v1147 = vld [vmem:[#allocation3 + $0x88] sm:$0xff]
      %v1148 = vsel %vm1112, %v1130, 1.0
      %v1149 = vsel %vm1113, %v1131, 1.0
      %v1150 = vsel %vm1114, %v1132, 1.0
      %v1151 = vsel %vm1115, %v1133, 1.0
      %v1152 = vsel %vm1116, %v1134, 1.0
      %v1153 = vsel %vm1117, %v1135, 1.0
      %v1154 = vsel %vm1118, %v1136, 1.0
      %v1155 = vsel %vm1119, %v1137, 1.0
      %v1156 = vsel %vm1120, %v1138, 1.0
      %v1157 = vsel %vm1121, %v1139, 1.0
      %v1158 = vsel %vm1122, %v1140, 1.0
      %v1159 = vsel %vm1123, %v1141, 1.0
      %v1160 = vsel %vm1124, %v1142, 1.0
      %v1161 = vsel %vm1125, %v1143, 1.0
      %v1162 = vsel %vm1126, %v1144, 1.0
      %v1163 = vsel %vm1127, %v1145, 1.0
      %v1164 = vsel %vm1128, %v1146, 1.0
      %v1165 = vsel %vm1129, %v1147, 1.0
      %v1166 = vrcp.pop %v1148
      %v1167 = vrcp.pop %v1149
      %v1168 = vrcp.pop %v1150
      %v1169 = vrcp.pop %v1151
      %v1170 = vrcp.pop %v1152
      %v1171 = vrcp.pop %v1153
      %v1172 = vrcp.pop %v1154
      %v1173 = vrcp.pop %v1155
      %v1174 = vrcp.pop %v1156
      %v1175 = vrcp.pop %v1157
      %v1176 = vrcp.pop %v1158
      %v1177 = vrcp.pop %v1159
      %v1178 = vrcp.pop %v1160
      %v1179 = vrcp.pop %v1161
      %v1180 = vrcp.pop %v1162
      %v1181 = vrcp.pop %v1163
      %v1182 = vrcp.pop %v1164
      %v1183 = vrcp.pop %v1165
      %v1184 = vld [vmem:[#allocation2] sm:$0xff]
      %v1185 = vld [vmem:[#allocation2 + $0x8] sm:$0xff]
      %v1186 = vld [vmem:[#allocation2 + $0x10] sm:$0xff]
      %v1187 = vld [vmem:[#allocation2 + $0x18] sm:$0xff]
      %v1188 = vld [vmem:[#allocation2 + $0x20] sm:$0xff]
      %v1189 = vld [vmem:[#allocation2 + $0x28] sm:$0xff]
      %v1190 = vld [vmem:[#allocation2 + $0x30] sm:$0xff]
      %v1191 = vld [vmem:[#allocation2 + $0x38] sm:$0xff]
      %v1192 = vld [vmem:[#allocation2 + $0x40] sm:$0xff]
      %v1193 = vld [vmem:[#allocation2 + $0x48] sm:$0xff]
      %v1194 = vld [vmem:[#allocation2 + $0x50] sm:$0xff]
      %v1195 = vld [vmem:[#allocation2 + $0x58] sm:$0xff]
      %v1196 = vld [vmem:[#allocation2 + $0x60] sm:$0xff]
      %v1197 = vld [vmem:[#allocation2 + $0x68] sm:$0xff]
      %v1198 = vld [vmem:[#allocation2 + $0x70] sm:$0xff]
      %v1199 = vld [vmem:[#allocation2 + $0x78] sm:$0xff]
      %v1200 = vld [vmem:[#allocation2 + $0x80] sm:$0xff]
      %v1201 = vld [vmem:[#allocation2 + $0x88] sm:$0xff]
      %v1202 = vld [vmem:[#allocation2 + $0x90] sm:$0xff]
      %v1203 = vld [vmem:[#allocation2 + $0x98] sm:$0xff]
      %v1204 = vld [vmem:[#allocation2 + $0xa0] sm:$0xff]
      %v1205 = vld [vmem:[#allocation2 + $0xa8] sm:$0xff]
      %v1206 = vld [vmem:[#allocation2 + $0xb0] sm:$0xff]
      %v1207 = vld [vmem:[#allocation2 + $0xb8] sm:$0xff]
      %v1208 = vld [vmem:[#allocation2 + $0xc0] sm:$0xff]
      %v1209 = vld [vmem:[#allocation2 + $0xc8] sm:$0xff]
      %v1210 = vld [vmem:[#allocation2 + $0xd0] sm:$0xff]
      %v1211 = vld [vmem:[#allocation2 + $0xd8] sm:$0xff]
      %v1212 = vld [vmem:[#allocation2 + $0xe0] sm:$0xff]
      %v1213 = vld [vmem:[#allocation2 + $0xe8] sm:$0xff]
      %v1214 = vld [vmem:[#allocation2 + $0xf0] sm:$0xff]
      %v1215 = vld [vmem:[#allocation2 + $0xf8] sm:$0xff]
      %v1216 = vld [vmem:[#allocation2 + $0x100] sm:$0xff]
      %v1217 = vld [vmem:[#allocation2 + $0x108] sm:$0xff]
      %v1218 = vld [vmem:[#allocation2 + $0x110] sm:$0xff]
      %v1219 = vld [vmem:[#allocation2 + $0x118] sm:$0xff]
      %1221 = vset.pattern.permute.xlu0 0
      %1222 = vperm.xlu0 %1221, %v1166
      %v1223 = vpop.permute.xlu0 %1222
      %1226 = vset.pattern.permute.xlu0 0
      %1227 = vperm.xlu0 %1226, %v1167
      %v1228 = vpop.permute.xlu0 %1227
      %1231 = vset.pattern.permute.xlu0 0
      %1232 = vperm.xlu0 %1231, %v1168
      %v1233 = vpop.permute.xlu0 %1232
      %1236 = vset.pattern.permute.xlu0 0
      %1237 = vperm.xlu0 %1236, %v1169
      %v1238 = vpop.permute.xlu0 %1237
      %1241 = vset.pattern.permute.xlu0 0
      %1242 = vperm.xlu0 %1241, %v1170
      %v1243 = vpop.permute.xlu0 %1242
      %1246 = vset.pattern.permute.xlu0 0
      %1247 = vperm.xlu0 %1246, %v1171
      %v1248 = vpop.permute.xlu0 %1247
      %1251 = vset.pattern.permute.xlu0 0
      %1252 = vperm.xlu0 %1251, %v1172
      %v1253 = vpop.permute.xlu0 %1252
      %1256 = vset.pattern.permute.xlu0 0
      %1257 = vperm.xlu0 %1256, %v1173
      %v1258 = vpop.permute.xlu0 %1257
      %1261 = vset.pattern.permute.xlu0 0
      %1262 = vperm.xlu0 %1261, %v1174
      %v1263 = vpop.permute.xlu0 %1262
      %1266 = vset.pattern.permute.xlu0 0
      %1267 = vperm.xlu0 %1266, %v1175
      %v1268 = vpop.permute.xlu0 %1267
      %1271 = vset.pattern.permute.xlu0 0
      %1272 = vperm.xlu0 %1271, %v1176
      %v1273 = vpop.permute.xlu0 %1272
      %1276 = vset.pattern.permute.xlu0 0
      %1277 = vperm.xlu0 %1276, %v1177
      %v1278 = vpop.permute.xlu0 %1277
      %1281 = vset.pattern.permute.xlu0 0
      %1282 = vperm.xlu0 %1281, %v1178
      %v1283 = vpop.permute.xlu0 %1282
      %1286 = vset.pattern.permute.xlu0 0
      %1287 = vperm.xlu0 %1286, %v1179
      %v1288 = vpop.permute.xlu0 %1287
      %1291 = vset.pattern.permute.xlu0 0
      %1292 = vperm.xlu0 %1291, %v1180
      %v1293 = vpop.permute.xlu0 %1292
      %1296 = vset.pattern.permute.xlu0 0
      %1297 = vperm.xlu0 %1296, %v1181
      %v1298 = vpop.permute.xlu0 %1297
      %1301 = vset.pattern.permute.xlu0 0
      %1302 = vperm.xlu0 %1301, %v1182
      %v1303 = vpop.permute.xlu0 %1302
      %1306 = vset.pattern.permute.xlu0 0
      %1307 = vperm.xlu0 %1306, %v1183
      %v1308 = vpop.permute.xlu0 %1307
      %v1310 = vmul.f32 %v1184, %v1223
      %v1311 = vmul.f32 %v1185, %v1223
      %v1312 = vmul.f32 %v1186, %v1228
      %v1313 = vmul.f32 %v1187, %v1228
      %v1314 = vmul.f32 %v1188, %v1233
      %v1315 = vmul.f32 %v1189, %v1233
      %v1316 = vmul.f32 %v1190, %v1238
      %v1317 = vmul.f32 %v1191, %v1238
      %v1318 = vmul.f32 %v1192, %v1243
      %v1319 = vmul.f32 %v1193, %v1243
      %v1320 = vmul.f32 %v1194, %v1248
      %v1321 = vmul.f32 %v1195, %v1248
      %v1322 = vmul.f32 %v1196, %v1253
      %v1323 = vmul.f32 %v1197, %v1253
      %v1324 = vmul.f32 %v1198, %v1258
      %v1325 = vmul.f32 %v1199, %v1258
      %v1326 = vmul.f32 %v1200, %v1263
      %v1327 = vmul.f32 %v1201, %v1263
      %v1328 = vmul.f32 %v1202, %v1268
      %v1329 = vmul.f32 %v1203, %v1268
      %v1330 = vmul.f32 %v1204, %v1273
      %v1331 = vmul.f32 %v1205, %v1273
      %v1332 = vmul.f32 %v1206, %v1278
      %v1333 = vmul.f32 %v1207, %v1278
      %v1334 = vmul.f32 %v1208, %v1283
      %v1335 = vmul.f32 %v1209, %v1283
      %v1336 = vmul.f32 %v1210, %v1288
      %v1337 = vmul.f32 %v1211, %v1288
      %v1338 = vmul.f32 %v1212, %v1293
      %v1339 = vmul.f32 %v1213, %v1293
      %v1340 = vmul.f32 %v1214, %v1298
      %v1341 = vmul.f32 %v1215, %v1298
      %v1342 = vmul.f32 %v1216, %v1303
      %v1343 = vmul.f32 %v1217, %v1303
      %v1344 = vmul.f32 %v1218, %v1308
      %v1345 = vmul.f32 %v1219, %v1308
      %v1346 = vmul.f32 %v1310, 1.442695
      %v1347 = vpow.pop %v1346
      %v1348 = vmul.f32 %v1311, 1.442695
      %v1349 = vpow.pop %v1348
      %v1350 = vmul.f32 %v1312, 1.442695
      %v1351 = vpow.pop %v1350
      %v1352 = vmul.f32 %v1313, 1.442695
      %v1353 = vpow.pop %v1352
      %v1354 = vmul.f32 %v1314, 1.442695
      %v1355 = vpow.pop %v1354
      %v1356 = vmul.f32 %v1315, 1.442695
      %v1357 = vpow.pop %v1356
      %v1358 = vmul.f32 %v1316, 1.442695
      %v1359 = vpow.pop %v1358
      %v1360 = vmul.f32 %v1317, 1.442695
      %v1361 = vpow.pop %v1360
      %v1362 = vmul.f32 %v1318, 1.442695
      %v1363 = vpow.pop %v1362
      %v1364 = vmul.f32 %v1319, 1.442695
      %v1365 = vpow.pop %v1364
      %v1366 = vmul.f32 %v1320, 1.442695
      %v1367 = vpow.pop %v1366
      %v1368 = vmul.f32 %v1321, 1.442695
      %v1369 = vpow.pop %v1368
      %v1370 = vmul.f32 %v1322, 1.442695
      %v1371 = vpow.pop %v1370
      %v1372 = vmul.f32 %v1323, 1.442695
      %v1373 = vpow.pop %v1372
      %v1374 = vmul.f32 %v1324, 1.442695
      %v1375 = vpow.pop %v1374
      %v1376 = vmul.f32 %v1325, 1.442695
      %v1377 = vpow.pop %v1376
      %v1378 = vmul.f32 %v1326, 1.442695
      %v1379 = vpow.pop %v1378
      %v1380 = vmul.f32 %v1327, 1.442695
      %v1381 = vpow.pop %v1380
      %v1382 = vmul.f32 %v1328, 1.442695
      %v1383 = vpow.pop %v1382
      %v1384 = vmul.f32 %v1329, 1.442695
      %v1385 = vpow.pop %v1384
      %v1386 = vmul.f32 %v1330, 1.442695
      %v1387 = vpow.pop %v1386
      %v1388 = vmul.f32 %v1331, 1.442695
      %v1389 = vpow.pop %v1388
      %v1390 = vmul.f32 %v1332, 1.442695
      %v1391 = vpow.pop %v1390
      %v1392 = vmul.f32 %v1333, 1.442695
      %v1393 = vpow.pop %v1392
      %v1394 = vmul.f32 %v1334, 1.442695
      %v1395 = vpow.pop %v1394
      %v1396 = vmul.f32 %v1335, 1.442695
      %v1397 = vpow.pop %v1396
      %v1398 = vmul.f32 %v1336, 1.442695
      %v1399 = vpow.pop %v1398
      %v1400 = vmul.f32 %v1337, 1.442695
      %v1401 = vpow.pop %v1400
      %v1402 = vmul.f32 %v1338, 1.442695
      %v1403 = vpow.pop %v1402
      %v1404 = vmul.f32 %v1339, 1.442695
      %v1405 = vpow.pop %v1404
      %v1406 = vmul.f32 %v1340, 1.442695
      %v1407 = vpow.pop %v1406
      %v1408 = vmul.f32 %v1341, 1.442695
      %v1409 = vpow.pop %v1408
      %v1410 = vmul.f32 %v1342, 1.442695
      %v1411 = vpow.pop %v1410
      %v1412 = vmul.f32 %v1343, 1.442695
      %v1413 = vpow.pop %v1412
      %v1414 = vmul.f32 %v1344, 1.442695
      %v1415 = vpow.pop %v1414
      %v1416 = vmul.f32 %v1345, 1.442695
      %v1417 = vpow.pop %v1416
      %v1418 = vadd.f32 %v1347, %v1349
      %1419 = vadd.xlane.f32.xlu0 %v1418
      %v1420 = vpop.xlane.xlu0 %1419
      %v1421 = vadd.f32 %v1351, %v1353
      %1422 = vadd.xlane.f32.xlu0 %v1421
      %v1423 = vpop.xlane.xlu0 %1422
      %v1424 = vadd.f32 %v1355, %v1357
      %1425 = vadd.xlane.f32.xlu0 %v1424
      %v1426 = vpop.xlane.xlu0 %1425
      %v1427 = vadd.f32 %v1359, %v1361
      %1428 = vadd.xlane.f32.xlu0 %v1427
      %v1429 = vpop.xlane.xlu0 %1428
      %v1430 = vadd.f32 %v1363, %v1365
      %1431 = vadd.xlane.f32.xlu0 %v1430
      %v1432 = vpop.xlane.xlu0 %1431
      %v1433 = vadd.f32 %v1367, %v1369
      %1434 = vadd.xlane.f32.xlu0 %v1433
      %v1435 = vpop.xlane.xlu0 %1434
      %v1436 = vadd.f32 %v1371, %v1373
      %1437 = vadd.xlane.f32.xlu0 %v1436
      %v1438 = vpop.xlane.xlu0 %1437
      %v1439 = vadd.f32 %v1375, %v1377
      %1440 = vadd.xlane.f32.xlu0 %v1439
      %v1441 = vpop.xlane.xlu0 %1440
      %v1442 = vadd.f32 %v1379, %v1381
      %1443 = vadd.xlane.f32.xlu0 %v1442
      %v1444 = vpop.xlane.xlu0 %1443
      %v1445 = vadd.f32 %v1383, %v1385
      %1446 = vadd.xlane.f32.xlu0 %v1445
      %v1447 = vpop.xlane.xlu0 %1446
      %v1448 = vadd.f32 %v1387, %v1389
      %1449 = vadd.xlane.f32.xlu0 %v1448
      %v1450 = vpop.xlane.xlu0 %1449
      %v1451 = vadd.f32 %v1391, %v1393
      %1452 = vadd.xlane.f32.xlu0 %v1451
      %v1453 = vpop.xlane.xlu0 %1452
      %v1454 = vadd.f32 %v1395, %v1397
      %1455 = vadd.xlane.f32.xlu0 %v1454
      %v1456 = vpop.xlane.xlu0 %1455
      %v1457 = vadd.f32 %v1399, %v1401
      %1458 = vadd.xlane.f32.xlu0 %v1457
      %v1459 = vpop.xlane.xlu0 %1458
      %v1460 = vadd.f32 %v1403, %v1405
      %1461 = vadd.xlane.f32.xlu0 %v1460
      %v1462 = vpop.xlane.xlu0 %1461
      %v1463 = vadd.f32 %v1407, %v1409
      %1464 = vadd.xlane.f32.xlu0 %v1463
      %v1465 = vpop.xlane.xlu0 %1464
      %v1466 = vadd.f32 %v1411, %v1413
      %1467 = vadd.xlane.f32.xlu0 %v1466
      %v1468 = vpop.xlane.xlu0 %1467
      %v1469 = vadd.f32 %v1415, %v1417
      %1470 = vadd.xlane.f32.xlu0 %v1469
      %v1471 = vpop.xlane.xlu0 %1470
      %v1472 = vadd.f32 %v1420, 0.0
      %v1473 = vadd.f32 %v1423, 0.0
      %v1474 = vadd.f32 %v1426, 0.0
      %v1475 = vadd.f32 %v1429, 0.0
      %v1476 = vadd.f32 %v1432, 0.0
      %v1477 = vadd.f32 %v1435, 0.0
      %v1478 = vadd.f32 %v1438, 0.0
      %v1479 = vadd.f32 %v1441, 0.0
      %v1480 = vadd.f32 %v1444, 0.0
      %v1481 = vadd.f32 %v1447, 0.0
      %v1482 = vadd.f32 %v1450, 0.0
      %v1483 = vadd.f32 %v1453, 0.0
      %v1484 = vadd.f32 %v1456, 0.0
      %v1485 = vadd.f32 %v1459, 0.0
      %v1486 = vadd.f32 %v1462, 0.0
      %v1487 = vadd.f32 %v1465, 0.0
      %v1488 = vadd.f32 %v1468, 0.0
      %v1489 = vadd.f32 %v1471, 0.0
      %v1490 = vlog2.pop %v1472
      %v1491 = vmul.f32 %v1490, 0.6931472
      %v1492 = vlog2.pop %v1473
      %v1493 = vmul.f32 %v1492, 0.6931472
      %v1494 = vlog2.pop %v1474
      %v1495 = vmul.f32 %v1494, 0.6931472
      %v1496 = vlog2.pop %v1475
      %v1497 = vmul.f32 %v1496, 0.6931472
      %v1498 = vlog2.pop %v1476
      %v1499 = vmul.f32 %v1498, 0.6931472
      %v1500 = vlog2.pop %v1477
      %v1501 = vmul.f32 %v1500, 0.6931472
      %v1502 = vlog2.pop %v1478
      %v1503 = vmul.f32 %v1502, 0.6931472
      %v1504 = vlog2.pop %v1479
      %v1505 = vmul.f32 %v1504, 0.6931472
      %v1506 = vlog2.pop %v1480
      %v1507 = vmul.f32 %v1506, 0.6931472
      %v1508 = vlog2.pop %v1481
      %v1509 = vmul.f32 %v1508, 0.6931472
      %v1510 = vlog2.pop %v1482
      %v1511 = vmul.f32 %v1510, 0.6931472
      %v1512 = vlog2.pop %v1483
      %v1513 = vmul.f32 %v1512, 0.6931472
      %v1514 = vlog2.pop %v1484
      %v1515 = vmul.f32 %v1514, 0.6931472
      %v1516 = vlog2.pop %v1485
      %v1517 = vmul.f32 %v1516, 0.6931472
      %v1518 = vlog2.pop %v1486
      %v1519 = vmul.f32 %v1518, 0.6931472
      %v1520 = vlog2.pop %v1487
      %v1521 = vmul.f32 %v1520, 0.6931472
      %v1522 = vlog2.pop %v1488
      %v1523 = vmul.f32 %v1522, 0.6931472
      %v1524 = vlog2.pop %v1489
      %v1525 = vmul.f32 %v1524, 0.6931472
      %v1526 = vadd.f32 %v1491, 0.0
      %v1527 = vadd.f32 %v1493, 0.0
      %v1528 = vadd.f32 %v1495, 0.0
      %v1529 = vadd.f32 %v1497, 0.0
      %v1530 = vadd.f32 %v1499, 0.0
      %v1531 = vadd.f32 %v1501, 0.0
      %v1532 = vadd.f32 %v1503, 0.0
      %v1533 = vadd.f32 %v1505, 0.0
      %v1534 = vadd.f32 %v1507, 0.0
      %v1535 = vadd.f32 %v1509, 0.0
      %v1536 = vadd.f32 %v1511, 0.0
      %v1537 = vadd.f32 %v1513, 0.0
      %v1538 = vadd.f32 %v1515, 0.0
      %v1539 = vadd.f32 %v1517, 0.0
      %v1540 = vadd.f32 %v1519, 0.0
      %v1541 = vadd.f32 %v1521, 0.0
      %v1542 = vadd.f32 %v1523, 0.0
      %v1543 = vadd.f32 %v1525, 0.0
      %v1544 = vld [vmem:[#allocation4] sm:$0xff]
      %v1545 = vld [vmem:[#allocation4 + $0x8] sm:$0xff]
      %v1546 = vld [vmem:[#allocation4 + $0x10] sm:$0xff]
      %v1547 = vld [vmem:[#allocation4 + $0x18] sm:$0xff]
      %v1548 = vld [vmem:[#allocation4 + $0x20] sm:$0xff]
      %v1549 = vld [vmem:[#allocation4 + $0x28] sm:$0xff]
      %v1550 = vld [vmem:[#allocation4 + $0x30] sm:$0xff]
      %v1551 = vld [vmem:[#allocation4 + $0x38] sm:$0xff]
      %v1552 = vld [vmem:[#allocation4 + $0x40] sm:$0xff]
      %v1553 = vld [vmem:[#allocation4 + $0x48] sm:$0xff]
      %v1554 = vld [vmem:[#allocation4 + $0x50] sm:$0xff]
      %v1555 = vld [vmem:[#allocation4 + $0x58] sm:$0xff]
      %v1556 = vld [vmem:[#allocation4 + $0x60] sm:$0xff]
      %v1557 = vld [vmem:[#allocation4 + $0x68] sm:$0xff]
      %v1558 = vld [vmem:[#allocation4 + $0x70] sm:$0xff]
      %v1559 = vld [vmem:[#allocation4 + $0x78] sm:$0xff]
      %v1560 = vld [vmem:[#allocation4 + $0x80] sm:$0xff]
      %v1561 = vld [vmem:[#allocation4 + $0x88] sm:$0xff]
      %v1562 = vmul.f32 %v1544, %v1166
      %v1563 = vmul.f32 %v1545, %v1167
      %v1564 = vmul.f32 %v1546, %v1168
      %v1565 = vmul.f32 %v1547, %v1169
      %v1566 = vmul.f32 %v1548, %v1170
      %v1567 = vmul.f32 %v1549, %v1171
      %v1568 = vmul.f32 %v1550, %v1172
      %v1569 = vmul.f32 %v1551, %v1173
      %v1570 = vmul.f32 %v1552, %v1174
      %v1571 = vmul.f32 %v1553, %v1175
      %v1572 = vmul.f32 %v1554, %v1176
      %v1573 = vmul.f32 %v1555, %v1177
      %v1574 = vmul.f32 %v1556, %v1178
      %v1575 = vmul.f32 %v1557, %v1179
      %v1576 = vmul.f32 %v1558, %v1180
      %v1577 = vmul.f32 %v1559, %v1181
      %v1578 = vmul.f32 %v1560, %v1182
      %v1579 = vmul.f32 %v1561, %v1183
      %v1580 = vsub.f32 %v1526, %v1562
      %v1581 = vsub.f32 %v1527, %v1563
      %v1582 = vsub.f32 %v1528, %v1564
      %v1583 = vsub.f32 %v1529, %v1565
      %v1584 = vsub.f32 %v1530, %v1566
      %v1585 = vsub.f32 %v1531, %v1567
      %v1586 = vsub.f32 %v1532, %v1568
      %v1587 = vsub.f32 %v1533, %v1569
      %v1588 = vsub.f32 %v1534, %v1570
      %v1589 = vsub.f32 %v1535, %v1571
      %v1590 = vsub.f32 %v1536, %v1572
      %v1591 = vsub.f32 %v1537, %v1573
      %v1592 = vsub.f32 %v1538, %v1574
      %v1593 = vsub.f32 %v1539, %v1575
      %v1594 = vsub.f32 %v1540, %v1576
      %v1595 = vsub.f32 %v1541, %v1577
      %v1596 = vsub.f32 %v1542, %v1578
      %v1597 = vsub.f32 %v1543, %v1579
      %v1598 = vsel %vm1112, %v1580, 0.0
      %v1599 = vsel %vm1113, %v1581, 0.0
      %v1600 = vsel %vm1114, %v1582, 0.0
      %v1601 = vsel %vm1115, %v1583, 0.0
      %v1602 = vsel %vm1116, %v1584, 0.0
      %v1603 = vsel %vm1117, %v1585, 0.0
      %v1604 = vsel %vm1118, %v1586, 0.0
      %v1605 = vsel %vm1119, %v1587, 0.0
      %v1606 = vsel %vm1120, %v1588, 0.0
      %v1607 = vsel %vm1121, %v1589, 0.0
      %v1608 = vsel %vm1122, %v1590, 0.0
      %v1609 = vsel %vm1123, %v1591, 0.0
      %v1610 = vsel %vm1124, %v1592, 0.0
      %v1611 = vsel %vm1125, %v1593, 0.0
      %v1612 = vsel %vm1126, %v1594, 0.0
      %v1613 = vsel %vm1127, %v1595, 0.0
      %v1614 = vsel %vm1128, %v1596, 0.0
      %v1615 = vsel %vm1129, %v1597, 0.0
      %1617 = vset.pattern.permute.xlu0 0
      %1618 = vperm.xlu0 %1617, %v1598
      %v1619 = vpop.permute.xlu0 %1618
      %1622 = vset.pattern.permute.xlu0 0
      %1623 = vperm.xlu0 %1622, %v1599
      %v1624 = vpop.permute.xlu0 %1623
      %1627 = vset.pattern.permute.xlu0 0
      %1628 = vperm.xlu0 %1627, %v1600
      %v1629 = vpop.permute.xlu0 %1628
      %1632 = vset.pattern.permute.xlu0 0
      %1633 = vperm.xlu0 %1632, %v1601
      %v1634 = vpop.permute.xlu0 %1633
      %1637 = vset.pattern.permute.xlu0 0
      %1638 = vperm.xlu0 %1637, %v1602
      %v1639 = vpop.permute.xlu0 %1638
      %1642 = vset.pattern.permute.xlu0 0
      %1643 = vperm.xlu0 %1642, %v1603
      %v1644 = vpop.permute.xlu0 %1643
      %1647 = vset.pattern.permute.xlu0 0
      %1648 = vperm.xlu0 %1647, %v1604
      %v1649 = vpop.permute.xlu0 %1648
      %1652 = vset.pattern.permute.xlu0 0
      %1653 = vperm.xlu0 %1652, %v1605
      %v1654 = vpop.permute.xlu0 %1653
      %1657 = vset.pattern.permute.xlu0 0
      %1658 = vperm.xlu0 %1657, %v1606
      %v1659 = vpop.permute.xlu0 %1658
      %1662 = vset.pattern.permute.xlu0 0
      %1663 = vperm.xlu0 %1662, %v1607
      %v1664 = vpop.permute.xlu0 %1663
      %1667 = vset.pattern.permute.xlu0 0
      %1668 = vperm.xlu0 %1667, %v1608
      %v1669 = vpop.permute.xlu0 %1668
      %1672 = vset.pattern.permute.xlu0 0
      %1673 = vperm.xlu0 %1672, %v1609
      %v1674 = vpop.permute.xlu0 %1673
      %1677 = vset.pattern.permute.xlu0 0
      %1678 = vperm.xlu0 %1677, %v1610
      %v1679 = vpop.permute.xlu0 %1678
      %1682 = vset.pattern.permute.xlu0 0
      %1683 = vperm.xlu0 %1682, %v1611
      %v1684 = vpop.permute.xlu0 %1683
      %1687 = vset.pattern.permute.xlu0 0
      %1688 = vperm.xlu0 %1687, %v1612
      %v1689 = vpop.permute.xlu0 %1688
      %1692 = vset.pattern.permute.xlu0 0
      %1693 = vperm.xlu0 %1692, %v1613
      %v1694 = vpop.permute.xlu0 %1693
      %1697 = vset.pattern.permute.xlu0 0
      %1698 = vperm.xlu0 %1697, %v1614
      %v1699 = vpop.permute.xlu0 %1698
      %1702 = vset.pattern.permute.xlu0 0
      %1703 = vperm.xlu0 %1702, %v1615
      %v1704 = vpop.permute.xlu0 %1703
      %1706 = vst [vmem:[#allocation6] sm:$0xff] %v1619
      %1707 = vst [vmem:[#allocation6 + $0x8] sm:$0xff] %v1624
      %1708 = vst [vmem:[#allocation6 + $0x10] sm:$0xff] %v1629
      %1709 = vst [vmem:[#allocation6 + $0x18] sm:$0xff] %v1634
      %1710 = vst [vmem:[#allocation6 + $0x20] sm:$0xff] %v1639
      %1711 = vst [vmem:[#allocation6 + $0x28] sm:$0xff] %v1644
      %1712 = vst [vmem:[#allocation6 + $0x30] sm:$0xff] %v1649
      %1713 = vst [vmem:[#allocation6 + $0x38] sm:$0xff] %v1654
      %1714 = vst [vmem:[#allocation6 + $0x40] sm:$0xff] %v1659
      %1715 = vst [vmem:[#allocation6 + $0x48] sm:$0xff] %v1664
      %1716 = vst [vmem:[#allocation6 + $0x50] sm:$0xff] %v1669
      %1717 = vst [vmem:[#allocation6 + $0x58] sm:$0xff] %v1674
      %1718 = vst [vmem:[#allocation6 + $0x60] sm:$0xff] %v1679
      %1719 = vst [vmem:[#allocation6 + $0x68] sm:$0xff] %v1684
      %1720 = vst [vmem:[#allocation6 + $0x70] sm:$0xff] %v1689
      %1721 = vst [vmem:[#allocation6 + $0x78] sm:$0xff] %v1694
      %1722 = vst [vmem:[#allocation6 + $0x80] sm:$0xff] %v1699
      %1723 = vst [vmem:[#allocation6 + $0x88] sm:$0xff] %v1704
    $region17: #{tpu_custom_call.1} parent=1 // pred_fallthru
      _
    // Predicated region
    $region18: #{tpu_custom_call.1} parent=1 // pred_check
      _
    $region19: #{tpu_custom_call.1} parent=1 // pred_check_branch
      %1725 = sbr.rel (0) target = $region21
    $region20: #{tpu_custom_call.1} parent=1 // pred_region
      %s1727 = ssub.s32 2304, 2304
      %1728 = vsyncadd [#allocation7], %s1727
      %s1729 = sshll.u32 [#allocation6], 4
      %s1730 = int_to_ptr.vmem [resolvable:$true] %s1729
      %1735 = dma.vmem_to_hbm [thread:$0]  %s1730, 2304, %s2, [#allocation7], 128, 128, 8
    $region21: #{tpu_custom_call.1} parent=1 // pred_fallthru
      _
    // Predicated region
    $region22: #{tpu_custom_call.1} parent=1 // pred_check
      _
    $region23: #{tpu_custom_call.1} parent=1 // pred_check_branch
      %1737 = sbr.rel (0) target = $region25
    $region24: #{tpu_custom_call.1} parent=1 // pred_region
      %1738 = dma.done [#allocation7], 2304
    $region25: #{tpu_custom_call.1} parent=1 // pred_fallthru
      _
    %1739 = vsyncpa [#allocation7], 1

</llo_original>
